<compile_context>
chip_gen: v5e
topology: v5e:2x2
jax: 0.10.0
libtpu: 0.0.40
codegen_flags: <defaults>
</compile_context>

<pallas_src>
import jax
import jax.numpy as jnp
from jax import lax
from jax.experimental import pallas as pl
from jax.experimental.pallas import tpu as pltpu

_EPS = 1e-5
_NEG_SLOPE = 0.01  # PyTorch LeakyReLU default


# --------------------------------------------------------------------------------------
# Pass 1: per-batch Gram matrix + row sums, accumulated across DHW tiles (arbitrary axis).
# --------------------------------------------------------------------------------------
def _stats_kernel(x_ref, gram_ref, rowsum_ref):
    @pl.when(pl.program_id(1) == 0)
    def _():
        gram_ref[...] = jnp.zeros_like(gram_ref)
        rowsum_ref[...] = jnp.zeros_like(rowsum_ref)

    x = x_ref[...]                                           # (Cin, tile)
    # G += x @ x^T  (Cin x Cin, contraction over the big tile -> good MXU shape)
    gram_ref[...] += lax.dot_general(x, x, (((1,), (1,)), ((), ())),
                                     preferred_element_type=jnp.float32)
    rowsum_ref[...] += jnp.sum(x, axis=1, keepdims=True).astype(jnp.float32)


# --------------------------------------------------------------------------------------
# Pass 2: y^T = w_s^T @ x (K8, tile); subtract folded bias; LeakyReLU; lane-dense store.
# --------------------------------------------------------------------------------------
def _norm_kernel(x_ref, ws_ref, b_ref, o_ref):
    x = x_ref[...]                                           # (Cin, tile)
    w = ws_ref[...]                                          # (Cin, K8), inv-std folded in
    yt = lax.dot_general(w, x, (((0,), (0,)), ((), ())),     # big operand x consumed as-is
                         preferred_element_type=jnp.float32)  # (K8, tile)
    yn = yt - b_ref[...]                                     # b: (K8, 1), lane-broadcast
    o_ref[...] = jnp.maximum(yn, _NEG_SLOPE * yn).astype(o_ref.dtype)


# --------------------------------------------------------------------------------------
# Generation-aware tiling helpers.
# --------------------------------------------------------------------------------------
def _vmem_capacity_bytes():
    try:
        cap = getattr(pltpu.get_tpu_info(), "vmem_capacity_bytes", None)
        if cap:
            return int(cap)
    except Exception:
        pass
    return 64 * 1024 * 1024   # conservative: v7x physical VMEM


def _choose_tiling(dhw, cin, k8, budget_bytes):
    """Pick a DHW tile and the (possibly padded) DHW length.

    Tile is a multiple of 128 whenever DHW is actually tiled; otherwise a single
    full-extent block is used (allowed regardless of divisibility)."""
    # Pass-2 working set per tile column: double-buffered output + f32 matmul
    # intermediate + double-buffered input block.
    per_col = 4 * (2 * k8 + k8 + 2 * cin)
    cap = max(128, min(1024, (budget_bytes // per_col) // 128 * 128))
    if dhw <= cap:
        return dhw, dhw                       # single block, no padding needed
    best = 0
    c = 128
    while c <= cap:                            # prefer an exact divisor (no padding)
        if dhw % c == 0:
            best = c
        c += 128
    if best:
        return best, dhw
    tile = cap                                 # pad DHW up to a multiple of the tile
    return tile, ((dhw + tile - 1) // tile) * tile


# --------------------------------------------------------------------------------------
# Forward wrapper.
# --------------------------------------------------------------------------------------
def up_conv3d_forward(x, weight, bias=None, *, interleave_to_ncdhw=True):
    """x: (N, Cin, D, H, W) f32; weight: (Cin, Cout, 2, 2, 2); bias: (Cout,) (unused —
    it cancels exactly under InstanceNorm3d(affine=False)).  Returns NCDHW 2x output
    (or the channels-major (N, Cout, 2,2,2, D, H, W) layout if interleave_to_ncdhw=False)."""
    del bias
    N, Cin, D, H, W = x.shape
    Cout = weight.shape[1]
    DHW = D * H * W
    K8 = Cout * 8

    vmem_cap = _vmem_capacity_bytes()
    vmem_limit = int(max(16 * 1024 * 1024, min(vmem_cap // 2, 64 * 1024 * 1024)))
    tile, DHW_pad = _choose_tiling(DHW, Cin, K8, vmem_limit // 2)
    T = DHW_pad // tile

    x_r = x.reshape(N, Cin, DHW)
    if DHW_pad != DHW:
        # Zero columns contribute nothing to G / rowsum (bias dropped), count stays DHW*8.
        x_r = jnp.pad(x_r, ((0, 0), (0, 0), (0, DHW_pad - DHW)))

    w_flat = weight.reshape(Cin, K8).astype(jnp.float32)   # col k = cout*8 + kd*4 + kh*2 + kw

    # ---------------- Pass 1: Gram matrix + row sums ----------------
    gram, rowsum = pl.pallas_call(
        _stats_kernel,
        out_shape=(jax.ShapeDtypeStruct((N, Cin, Cin), jnp.float32),
                   jax.ShapeDtypeStruct((N, Cin, 1), jnp.float32)),
        grid_spec=pltpu.PrefetchScalarGridSpec(
            num_scalar_prefetch=0,
            grid=(N, T),
            in_specs=[pl.BlockSpec((None, Cin, tile), lambda n, t: (n, 0, t))],
            out_specs=[pl.BlockSpec((None, Cin, Cin), lambda n, t: (n, 0, 0)),
                       pl.BlockSpec((None, Cin, 1), lambda n, t: (n, 0, 0))],
        ),
        compiler_params=pltpu.CompilerParams(
            dimension_semantics=("parallel", "arbitrary"),
            vmem_limit_bytes=vmem_limit),
    )(x_r)

    # ---------------- Tiny finalize (wrapper-side, exact broadcast-sums) ----------------
    cnt = jnp.float32(DHW * 8)                                   # real count (padding excluded)
    s = rowsum[:, :, 0]                                          # (N, Cin)
    sum_col = jnp.sum(s[:, :, None] * w_flat[None], axis=1)      # (N, K8)
    gw = jnp.sum(gram[:, :, :, None] * w_flat[None, None, :, :], axis=2)   # (N, Cin, K8)
    sumsq_col = jnp.sum(gw * w_flat[None], axis=1)               # (N, K8)

    sum_c = sum_col.reshape(N, Cout, 8).sum(-1)                  # (N, Cout)
    sumsq_c = sumsq_col.reshape(N, Cout, 8).sum(-1)              # (N, Cout)
    mean_c = sum_c / cnt
    # E[y^2]-E[y]^2 can go slightly negative under cancellation; clamp before rsqrt.
    var_c = jnp.maximum(sumsq_c / cnt - mean_c * mean_c, 0.0)
    inv_c = lax.rsqrt(var_c + _EPS)

    inv_col = jnp.repeat(inv_c, 8, axis=1)                       # (N, K8)
    mean_col = jnp.repeat(mean_c, 8, axis=1)                     # (N, K8)
    w_s = (w_flat[None] * inv_col[:, None, :]).astype(jnp.float32)   # (N, Cin, K8)
    b = (mean_col * inv_col)[:, :, None].astype(jnp.float32)         # (N, K8, 1)

    # ---------------- Pass 2: normalized transposed-conv output, channels-major ----------------
    out_dtype = x.dtype
    itemsize = jnp.dtype(out_dtype).itemsize
    flops = 2 * N * DHW_pad * Cin * K8 + 2 * N * DHW_pad * K8
    bytes_acc = 4 * (N * Cin * DHW_pad + N * Cin * K8 + N * K8) + itemsize * N * K8 * DHW_pad

    y_t = pl.pallas_call(
        _norm_kernel,
        out_shape=jax.ShapeDtypeStruct((N, K8, DHW_pad), out_dtype),
        grid_spec=pltpu.PrefetchScalarGridSpec(
            num_scalar_prefetch=0,
            grid=(N, T),
            in_specs=[
                pl.BlockSpec((None, Cin, tile), lambda n, t: (n, 0, t)),
                pl.BlockSpec((None, Cin, K8), lambda n, t: (n, 0, 0)),
                pl.BlockSpec((None, K8, 1), lambda n, t: (n, 0, 0)),
            ],
            out_specs=pl.BlockSpec((None, K8, tile), lambda n, t: (n, 0, t)),
        ),
        compiler_params=pltpu.CompilerParams(
            dimension_semantics=("parallel", "parallel"),
            vmem_limit_bytes=vmem_limit),
        cost_estimate=pl.CostEstimate(flops=int(flops), transcendentals=0,
                                      bytes_accessed=int(bytes_acc)),
    )(x_r, w_s, b)

    if DHW_pad != DHW:
        y_t = y_t[:, :, :DHW]
    y = y_t.reshape(N, Cout, 2, 2, 2, D, H, W)
    if not interleave_to_ncdhw:
        # Channels-major fast path: skip the full-size NCDHW interleave entirely.
        return y
    # Final NCDHW interleave (module contract) — pure layout transpose left to XLA.
    y = jnp.transpose(y, (0, 1, 5, 2, 6, 3, 7, 4))
    return y.reshape(N, Cout, 2 * D, 2 * H, 2 * W)


# --------------------------------------------------------------------------------------
# Pure-JAX reference: ConvTranspose3d(k=s=2,p=0) + InstanceNorm3d(affine=False) + LeakyReLU.
# --------------------------------------------------------------------------------------
def _reference(x, weight, bias):
    N, Cin, D, H, W = x.shape
    Cout = weight.shape[1]
    y = jnp.einsum("ncdhw,coijk->ndhwoijk", x, weight,
                   precision=jax.lax.Precision.HIGHEST)
    y = y + bias[None, None, None, None, :, None, None, None]
    mean = jnp.mean(y, axis=(1, 2, 3, 5, 6, 7), keepdims=True)
    var = jnp.mean((y - mean) ** 2, axis=(1, 2, 3, 5, 6, 7), keepdims=True)
    yn = (y - mean) / jnp.sqrt(var + _EPS)
    yn = jnp.where(yn >= 0, yn, _NEG_SLOPE * yn)
    yn = jnp.transpose(yn, (0, 4, 1, 5, 2, 6, 3, 7))
    return yn.reshape(N, Cout, 2 * D, 2 * H, 2 * W)


if __name__ == "__main__":
    key = jax.random.PRNGKey(0)
    k_x, k_w, k_b = jax.random.split(key, 3)

    N, Cin, Cout = 2, 4, 8
    D = H = W = 16   # DHW=4096 -> exercises multi-tile accumulation (tile=1024, T=4)

    # Test data rounded to bf16-representable values so MXU operand handling cannot affect
    # the comparison; parameter ranges follow nn.ConvTranspose3d's default init.
    x = jax.random.normal(k_x, (N, Cin, D, H, W), jnp.float32)
    x = x.astype(jnp.bfloat16).astype(jnp.float32)
    fan = Cin * 2 * 2 * 2
    bound = 1.0 / (fan ** 0.5)
    weight = jax.random.uniform(k_w, (Cin, Cout, 2, 2, 2), jnp.float32, -bound, bound)
    weight = weight.astype(jnp.bfloat16).astype(jnp.float32)
    bias = jax.random.uniform(k_b, (Cout,), jnp.float32, -bound, bound)

    out = jax.block_until_ready(jax.jit(up_conv3d_forward)(x, weight, bias))
    ref = _reference(x, weight, bias)

    assert out.shape == (N, Cout, 2 * D, 2 * H, 2 * W)
    err = float(jnp.max(jnp.abs(out - ref)))
    assert err < 1e-3, f"max abs err {err}"
    print("KERNEL_OK")
</pallas_src>

<mosaic_0001>
module attributes {stable_mosaic.version = 11 : i64} {
  func.func @_stats_kernel(%arg0: i32, %arg1: i32, %arg2: memref<1x4x1024xf32, #tpu.memory_space<vmem>>, %arg3: memref<1x4x4xf32, #tpu.memory_space<vmem>>, %arg4: memref<1x4x1xf32, #tpu.memory_space<vmem>>) attributes {dimension_semantics = [#tpu.dimension_semantics<parallel>, #tpu.dimension_semantics<arbitrary>], iteration_bounds = array<i64: 2, 4>, scalar_prefetch = 0 : i64, scratch_operands = 0 : i64, tpu.core_type = #tpu.core_type<tc>, window_params = [{transform_indices = @transform_0, window_bounds = array<i64: 1, 4, 1024>}, {transform_indices = @transform_1, window_bounds = array<i64: 1, 4, 4>}, {transform_indices = @transform_2, window_bounds = array<i64: 1, 4, 1>}]} {
    %c0_i32 = arith.constant 0 : i32
    %0 = arith.cmpi eq, %arg1, %c0_i32 : i32
    %1 = arith.extui %0 : i1 to i32
    %c0_i32_0 = arith.constant 0 : i32
    %2 = arith.cmpi ne, %1, %c0_i32_0 : i32
    scf.if %2 {
      %cst_16 = arith.constant 0.000000e+00 : f32
      %20 = vector.broadcast %cst_16 : f32 to vector<4x4xf32>
      %c0_17 = arith.constant 0 : index
      %c0_18 = arith.constant 0 : index
      %c0_19 = arith.constant 0 : index
      %21 = vector.load %arg3[%c0_17, %c0_18, %c0_19] : memref<1x4x4xf32, #tpu.memory_space<vmem>>, vector<1x4x4xf32>
      %22 = vector.shape_cast %21 : vector<1x4x4xf32> to vector<4x4xf32>
      %23 = vector.shape_cast %20 : vector<4x4xf32> to vector<1x4x4xf32>
      tpu.vector_store %arg3[%c0_17, %c0_18, %c0_19], %23 {strides = array<i32>} : memref<1x4x4xf32, #tpu.memory_space<vmem>>, vector<1x4x4xf32>,
      %cst_20 = arith.constant 0.000000e+00 : f32
      %24 = vector.broadcast %cst_20 : f32 to vector<4x1xf32>
      %c0_21 = arith.constant 0 : index
      %c0_22 = arith.constant 0 : index
      %c0_23 = arith.constant 0 : index
      %25 = vector.load %arg4[%c0_21, %c0_22, %c0_23] : memref<1x4x1xf32, #tpu.memory_space<vmem>>, vector<1x4x1xf32>
      %26 = vector.shape_cast %25 : vector<1x4x1xf32> to vector<4x1xf32>
      %27 = vector.shape_cast %24 : vector<4x1xf32> to vector<1x4x1xf32>
      tpu.vector_store %arg4[%c0_21, %c0_22, %c0_23], %27 {strides = array<i32>} : memref<1x4x1xf32, #tpu.memory_space<vmem>>, vector<1x4x1xf32>,
    } else {
    }
    %c0 = arith.constant 0 : index
    %c0_1 = arith.constant 0 : index
    %c0_2 = arith.constant 0 : index
    %3 = vector.load %arg2[%c0, %c0_1, %c0_2] : memref<1x4x1024xf32, #tpu.memory_space<vmem>>, vector<1x4x1024xf32>
    %4 = vector.shape_cast %3 : vector<1x4x1024xf32> to vector<4x1024xf32>
    %c0_3 = arith.constant 0 : index
    %c0_4 = arith.constant 0 : index
    %c0_5 = arith.constant 0 : index
    %5 = vector.load %arg3[%c0_3, %c0_4, %c0_5] : memref<1x4x4xf32, #tpu.memory_space<vmem>>, vector<1x4x4xf32>
    %6 = vector.shape_cast %5 : vector<1x4x4xf32> to vector<4x4xf32>
    %cst = arith.constant dense<0.000000e+00> : vector<4x4xf32>
    %7 = tpu.matmul %4, %4, %cst {dimension_numbers = #tpu.dot_dimension_numbers<[1], [1], [0], [0], [0, 0, 1, 0], [], []>} : vector<4x1024xf32>, vector<4x1024xf32>, vector<4x4xf32> -> vector<4x4xf32>
    %8 = arith.addf %6, %7 : vector<4x4xf32>
    %c0_6 = arith.constant 0 : index
    %c0_7 = arith.constant 0 : index
    %c0_8 = arith.constant 0 : index
    %9 = vector.load %arg3[%c0_6, %c0_7, %c0_8] : memref<1x4x4xf32, #tpu.memory_space<vmem>>, vector<1x4x4xf32>
    %10 = vector.shape_cast %9 : vector<1x4x4xf32> to vector<4x4xf32>
    %11 = vector.shape_cast %8 : vector<4x4xf32> to vector<1x4x4xf32>
    tpu.vector_store %arg3[%c0_6, %c0_7, %c0_8], %11 {strides = array<i32>} : memref<1x4x4xf32, #tpu.memory_space<vmem>>, vector<1x4x4xf32>,
    %c0_9 = arith.constant 0 : index
    %c0_10 = arith.constant 0 : index
    %c0_11 = arith.constant 0 : index
    %12 = vector.load %arg4[%c0_9, %c0_10, %c0_11] : memref<1x4x1xf32, #tpu.memory_space<vmem>>, vector<1x4x1xf32>
    %13 = vector.shape_cast %12 : vector<1x4x1xf32> to vector<4x1xf32>
    %cst_12 = arith.constant dense<0.000000e+00> : vector<4xf32>
    %14 = vector.multi_reduction <add>, %4, %cst_12 [1] : vector<4x1024xf32> to vector<4xf32>
    %15 = vector.shape_cast %14 : vector<4xf32> to vector<4x1xf32>
    %16 = arith.addf %13, %15 : vector<4x1xf32>
    %c0_13 = arith.constant 0 : index
    %c0_14 = arith.constant 0 : index
    %c0_15 = arith.constant 0 : index
    %17 = vector.load %arg4[%c0_13, %c0_14, %c0_15] : memref<1x4x1xf32, #tpu.memory_space<vmem>>, vector<1x4x1xf32>
    %18 = vector.shape_cast %17 : vector<1x4x1xf32> to vector<4x1xf32>
    %19 = vector.shape_cast %16 : vector<4x1xf32> to vector<1x4x1xf32>
    tpu.vector_store %arg4[%c0_13, %c0_14, %c0_15], %19 {strides = array<i32>} : memref<1x4x1xf32, #tpu.memory_space<vmem>>, vector<1x4x1xf32>,
    return
  }
  func.func @transform_0(%arg0: i32, %arg1: i32) -> (i32, i32, i32) {
    %c0_i32 = arith.constant 0 : i32
    %c0_i32_0 = arith.constant 0 : i32
    return %arg0, %c0_i32, %arg1 : i32, i32, i32
  }
  func.func @transform_1(%arg0: i32, %arg1: i32) -> (i32, i32, i32) {
    %c0_i32 = arith.constant 0 : i32
    %c0_i32_0 = arith.constant 0 : i32
    %c0_i32_1 = arith.constant 0 : i32
    return %arg0, %c0_i32, %c0_i32_0 : i32, i32, i32
  }
  func.func @transform_2(%arg0: i32, %arg1: i32) -> (i32, i32, i32) {
    %c0_i32 = arith.constant 0 : i32
    %c0_i32_0 = arith.constant 0 : i32
    %c0_i32_1 = arith.constant 0 : i32
    return %arg0, %c0_i32, %c0_i32_0 : i32, i32, i32
  }
}

module attributes {stable_mosaic.version = 11 : i64} {
  func.func @_norm_kernel(%arg0: i32, %arg1: i32, %arg2: memref<1x4x1024xf32, #tpu.memory_space<vmem>>, %arg3: memref<1x4x64xf32, #tpu.memory_space<vmem>>, %arg4: memref<1x64x1xf32, #tpu.memory_space<vmem>>, %arg5: memref<1x64x1024xf32, #tpu.memory_space<vmem>>) attributes {dimension_semantics = [#tpu.dimension_semantics<parallel>, #tpu.dimension_semantics<parallel>], iteration_bounds = array<i64: 2, 4>, scalar_prefetch = 0 : i64, scratch_operands = 0 : i64, tpu.core_type = #tpu.core_type<tc>, window_params = [{transform_indices = @transform_0, window_bounds = array<i64: 1, 4, 1024>}, {transform_indices = @transform_1, window_bounds = array<i64: 1, 4, 64>}, {transform_indices = @transform_2, window_bounds = array<i64: 1, 64, 1>}, {transform_indices = @transform_3, window_bounds = array<i64: 1, 64, 1024>}]} {
    %c0 = arith.constant 0 : index
    %c0_0 = arith.constant 0 : index
    %c0_1 = arith.constant 0 : index
    %0 = vector.load %arg2[%c0, %c0_0, %c0_1] : memref<1x4x1024xf32, #tpu.memory_space<vmem>>, vector<1x4x1024xf32>
    %1 = vector.shape_cast %0 : vector<1x4x1024xf32> to vector<4x1024xf32>
    %c0_2 = arith.constant 0 : index
    %c0_3 = arith.constant 0 : index
    %c0_4 = arith.constant 0 : index
    %2 = vector.load %arg3[%c0_2, %c0_3, %c0_4] : memref<1x4x64xf32, #tpu.memory_space<vmem>>, vector<1x4x64xf32>
    %3 = vector.shape_cast %2 : vector<1x4x64xf32> to vector<4x64xf32>
    %cst = arith.constant dense<0.000000e+00> : vector<64x1024xf32>
    %4 = tpu.matmul %3, %1, %cst {dimension_numbers = #tpu.dot_dimension_numbers<[0], [0], [1], [1], [0, 1, 1, 1], [], []>} : vector<4x64xf32>, vector<4x1024xf32>, vector<64x1024xf32> -> vector<64x1024xf32>
    %c0_5 = arith.constant 0 : index
    %c0_6 = arith.constant 0 : index
    %c0_7 = arith.constant 0 : index
    %5 = vector.load %arg4[%c0_5, %c0_6, %c0_7] : memref<1x64x1xf32, #tpu.memory_space<vmem>>, vector<1x64x1xf32>
    %6 = vector.shape_cast %5 : vector<1x64x1xf32> to vector<64x1xf32>
    %7 = vector.broadcast %6 : vector<64x1xf32> to vector<64x1024xf32>
    %8 = arith.subf %4, %7 : vector<64x1024xf32>
    %cst_8 = arith.constant 0.00999999977 : f32
    %9 = vector.broadcast %cst_8 : f32 to vector<64x1024xf32>
    %10 = arith.mulf %9, %8 : vector<64x1024xf32>
    %11 = arith.maximumf %8, %10 : vector<64x1024xf32>
    %c0_9 = arith.constant 0 : index
    %c0_10 = arith.constant 0 : index
    %c0_11 = arith.constant 0 : index
    %12 = vector.load %arg5[%c0_9, %c0_10, %c0_11] : memref<1x64x1024xf32, #tpu.memory_space<vmem>>, vector<1x64x1024xf32>
    %13 = vector.shape_cast %12 : vector<1x64x1024xf32> to vector<64x1024xf32>
    %14 = vector.shape_cast %11 : vector<64x1024xf32> to vector<1x64x1024xf32>
    tpu.vector_store %arg5[%c0_9, %c0_10, %c0_11], %14 {strides = array<i32>} : memref<1x64x1024xf32, #tpu.memory_space<vmem>>, vector<1x64x1024xf32>,
    return
  }
  func.func @transform_0(%arg0: i32, %arg1: i32) -> (i32, i32, i32) {
    %c0_i32 = arith.constant 0 : i32
    %c0_i32_0 = arith.constant 0 : i32
    return %arg0, %c0_i32, %arg1 : i32, i32, i32
  }
  func.func @transform_1(%arg0: i32, %arg1: i32) -> (i32, i32, i32) {
    %c0_i32 = arith.constant 0 : i32
    %c0_i32_0 = arith.constant 0 : i32
    %c0_i32_1 = arith.constant 0 : i32
    return %arg0, %c0_i32, %c0_i32_0 : i32, i32, i32
  }
  func.func @transform_2(%arg0: i32, %arg1: i32) -> (i32, i32, i32) {
    %c0_i32 = arith.constant 0 : i32
    %c0_i32_0 = arith.constant 0 : i32
    %c0_i32_1 = arith.constant 0 : i32
    return %arg0, %c0_i32, %c0_i32_0 : i32, i32, i32
  }
  func.func @transform_3(%arg0: i32, %arg1: i32) -> (i32, i32, i32) {
    %c0_i32 = arith.constant 0 : i32
    %c0_i32_0 = arith.constant 0 : i32
    return %arg0, %c0_i32, %arg1 : i32, i32, i32
  }
}

</mosaic_0001>

<llo_original>
// kernel: mul.50
$region0: #{mul.50}
  %s0 = inlined_call_operand.vmem [shape: f32[2,8,8], index: 0, kind: input, shape index: {}]
  %s1 = inlined_call_operand.vmem [shape: f32[2,64], index: 1, kind: output, shape index: {}]
  $region1: #{mul.50} parent=0
    #allocation0 [shape = 'u8[4096]{0}', space=vmem, size = 0x1000, scoped, tag = 'scoped mem for output reshape']
    %s2 = smov 3
    %v3 = vld [vmem:[%s0] ss:$8 sm:%s2]
    %vm4 = vcmask 64512
    %5 = vst.msk [vmem:[#allocation0] sm:$0x3] %vm4, %v3
    %s6 = scalar_lea.vmem %s0, 7
    %s7 = smov 3
    %v8 = vld [vmem:[%s6] ss:$8 sm:%s7]
    %9 = vrot.lane.b32.xlu0 %v8, 56
    %v10 = vpop.permute.xlu0 %9
    %vm11 = vcmask 523712
    %12 = vst.msk [vmem:[#allocation0] sm:$0x3] %vm11, %v10
    %s13 = scalar_lea.vmem %s0, 6
    %s14 = smov 3
    %v15 = vld [vmem:[%s13] ss:$8 sm:%s14]
    %16 = vrot.lane.b32.xlu0 %v15, 48
    %v17 = vpop.permute.xlu0 %16
    %vm18 = vcmask 458112
    %19 = vst.msk [vmem:[#allocation0] sm:$0x3] %vm18, %v17
    %s20 = scalar_lea.vmem %s0, 5
    %s21 = smov 3
    %v22 = vld [vmem:[%s20] ss:$8 sm:%s21]
    %23 = vrot.lane.b32.xlu0 %v22, 40
    %v24 = vpop.permute.xlu0 %23
    %vm25 = vcmask 392512
    %26 = vst.msk [vmem:[#allocation0] sm:$0x3] %vm25, %v24
    %s27 = scalar_lea.vmem %s0, 4
    %s28 = smov 3
    %v29 = vld [vmem:[%s27] ss:$8 sm:%s28]
    %30 = vrot.lane.b32.xlu0 %v29, 32
    %v31 = vpop.permute.xlu0 %30
    %vm32 = vcmask 326912
    %33 = vst.msk [vmem:[#allocation0] sm:$0x3] %vm32, %v31
    %s34 = scalar_lea.vmem %s0, 3
    %s35 = smov 3
    %v36 = vld [vmem:[%s34] ss:$8 sm:%s35]
    %37 = vrot.lane.b32.xlu0 %v36, 24
    %v38 = vpop.permute.xlu0 %37
    %vm39 = vcmask 261312
    %40 = vst.msk [vmem:[#allocation0] sm:$0x3] %vm39, %v38
    %s41 = scalar_lea.vmem %s0, 2
    %s42 = smov 3
    %v43 = vld [vmem:[%s41] ss:$8 sm:%s42]
    %44 = vrot.lane.b32.xlu0 %v43, 16
    %v45 = vpop.permute.xlu0 %44
    %vm46 = vcmask 195712
    %47 = vst.msk [vmem:[#allocation0] sm:$0x3] %vm46, %v45
    %s48 = scalar_lea.vmem %s0, 1
    %s49 = smov 3
    %v50 = vld [vmem:[%s48] ss:$8 sm:%s49]
    %51 = vrot.lane.b32.xlu0 %v50, 8
    %v52 = vpop.permute.xlu0 %51
    %vm53 = vcmask 130112
    %54 = vst.msk [vmem:[#allocation0] sm:$0x3] %vm53, %v52
    %s56 = ssub.s32 4, 1
    %v57 = vld [vmem:[#allocation0] sm:%s56]
    %s59 = ssub.s32 4, 1
    %60 = vst [vmem:[%s1] sm:%s59] %v57

// kernel: up_conv3d_forward.2
$region0: #{up_conv3d_forward.2}
  #allocation0 [shape = 'u32[]', space=smem, size = 0x4, offset = 0x4, fixed_abs, tag = 'smem constant byte address 0x4 - core index']
  #allocation1 [shape = 'u32[72,128]{1,0:T(1,128)}', space=vmem, size = 0x9000, scoped, tag = 'internal scratch']
  %s0 = inlined_call_operand.vmem [shape: f32[2,4,4096], index: 0, kind: input, shape index: {}]
  %s1 = inlined_call_operand.vmem [shape: f32[2,4,4], index: 1, kind: output, shape index: {0}]
  %s2 = inlined_call_operand.vmem [shape: f32[2,4,1], index: 2, kind: output, shape index: {1}]
  %3 = xla_tuple %s1, %s2
  %s4 = sld [smem:[#allocation0]]
  $region49: #{up_conv3d_forward.2} parent=0
    _
  %s6 = ssub.s32 1, %s4
  %s7 = scalar_select 0, %s6, %s4
  loop: start=0, step=1, limit=10
  $region2: #{up_conv3d_forward.2} parent=0 // loop_pre_header
    _
  $region3: #{up_conv3d_forward.2} parent=0 // loop_header
    %s9 = sphi 0, %s13
    %p10 = scmp.ge.s32.totalorder %s9, 10
    %s16 = sphi 0, %s28
    %s17 = sphi 0, %s24
    %s18 = sphi 0, %s16
    %s19 = sphi 0, %s17
    %s20 = sphi 0, %s18
    %s21 = sphi 0, %s19
    %s33 = sphi 0, %s35
    %s36 = sphi 0, %s33
    %s37 = sphi 0, %s36
    %s53 = sphi 0, %s37
    %s59 = sphi 0, %s61
    %s62 = sphi 0, %s59
    %s63 = sphi 0, %s62
    %s79 = sphi 0, %s63
    %s85 = sphi 0, %s87
    %s88 = sphi 0, %s85
    %s89 = sphi 0, %s88
    %s105 = sphi 0, %s89
  $region4: #{up_conv3d_forward.2} parent=0 // loop_header_branch
    %12 = sbr.rel (%p10) target = $region8
  $region5: #{up_conv3d_forward.2} parent=0 // loop_body
    %s14 = ssub.s32 %s9, 1
    %s15 = ssub.s32 %s9, 2
    %s22 = sadd.s32 1, %s17
    %p23 = scmp.ge.s32.totalorder %s22, 4
    %s24 = scalar_select %p23, 0, %s22
    %s25 = sadd.s32 1, %s16
    %s26 = scalar_select %p23, %s25, %s16
    %p27 = scmp.ge.s32.totalorder %s26, 2
    %s28 = scalar_select %p27, 0, %s26
    %s29 = ssub.s32 %s16, %s28
    %s30 = ssub.s32 %s17, %s24
    %s31 = sor.u32 %s29, %s30
    %p32 = scmp.eq.s32.totalorder %s31, 0
    %s34 = sadd.s32 %s33, 1
    %s35 = scalar_select %p32, %s33, %s34
    %p38 = pneg %p32
    %p39 = scmp.eq.s32.totalorder %s9, 7
    %p40 = por %p38, %p39
    %p41 = scmp.ne.s32.totalorder %s33, %s36
    %p42 = scmp.eq.s32.totalorder %s9, 0
    %p43 = por %p41, %p42
    %p44 = scmp.ne.s32.totalorder %s33, %s36
    %p45 = scmp.eq.s32.totalorder %s14, 7
    %p46 = por %p44, %p45
    %p47 = scmp.ne.s32.totalorder %s36, %s37
    %p48 = scmp.eq.s32.totalorder %s14, 0
    %p49 = por %p47, %p48
    %p50 = scmp.ne.s32.totalorder %s36, %s37
    %p51 = scmp.eq.s32.totalorder %s15, 7
    %p52 = por %p50, %p51
    %p54 = scmp.ne.s32.totalorder %s37, %s53
    %p55 = scmp.eq.s32.totalorder %s15, 0
    %p56 = por %p54, %p55
    %s57 = ssub.s32 %s16, %s28
    %p58 = scmp.eq.s32.totalorder %s57, 0
    %s60 = sadd.s32 %s59, 1
    %s61 = scalar_select %p58, %s59, %s60
    %p64 = pneg %p58
    %p65 = scmp.eq.s32.totalorder %s9, 7
    %p66 = por %p64, %p65
    %p67 = scmp.ne.s32.totalorder %s59, %s62
    %p68 = scmp.eq.s32.totalorder %s9, 0
    %p69 = por %p67, %p68
    %p70 = scmp.ne.s32.totalorder %s59, %s62
    %p71 = scmp.eq.s32.totalorder %s14, 7
    %p72 = por %p70, %p71
    %p73 = scmp.ne.s32.totalorder %s62, %s63
    %p74 = scmp.eq.s32.totalorder %s14, 0
    %p75 = por %p73, %p74
    %p76 = scmp.ne.s32.totalorder %s62, %s63
    %p77 = scmp.eq.s32.totalorder %s15, 7
    %p78 = por %p76, %p77
    %p80 = scmp.ne.s32.totalorder %s63, %s79
    %p81 = scmp.eq.s32.totalorder %s15, 0
    %p82 = por %p80, %p81
    %s83 = ssub.s32 %s16, %s28
    %p84 = scmp.eq.s32.totalorder %s83, 0
    %s86 = sadd.s32 %s85, 1
    %s87 = scalar_select %p84, %s85, %s86
    %p90 = pneg %p84
    %p91 = scmp.eq.s32.totalorder %s9, 7
    %p92 = por %p90, %p91
    %p93 = scmp.ne.s32.totalorder %s85, %s88
    %p94 = scmp.eq.s32.totalorder %s9, 0
    %p95 = por %p93, %p94
    %p96 = scmp.ne.s32.totalorder %s85, %s88
    %p97 = scmp.eq.s32.totalorder %s14, 7
    %p98 = por %p96, %p97
    %p99 = scmp.ne.s32.totalorder %s88, %s89
    %p100 = scmp.eq.s32.totalorder %s14, 0
    %p101 = por %p99, %p100
    %p102 = scmp.ne.s32.totalorder %s88, %s89
    %p103 = scmp.eq.s32.totalorder %s15, 7
    %p104 = por %p102, %p103
    %p106 = scmp.ne.s32.totalorder %s89, %s105
    %p107 = scmp.eq.s32.totalorder %s15, 0
    %p108 = por %p106, %p107
    %p109 = scmp.le.s32.totalorder 1, %s9
    %p110 = scmp.lt.s32.totalorder %s9, 9
    %p111 = pnand %p109, %p110
    %p112 = pneg %p111
    // Predicated region
    $region9: #{up_conv3d_forward.2} parent=5 // pred_check
      _
    $region10: #{up_conv3d_forward.2} parent=5 // pred_check_branch
      %114 = sbr.rel (%p111) target = $region12
    $region11: #{up_conv3d_forward.2} parent=5 // pred_region
      %s115 = ssub.s32 %s9, 1
    $region12: #{up_conv3d_forward.2} parent=5 // pred_fallthru
      _
    %p116 = scmp.lt.s32.totalorder %s9, 8
    // Predicated region
    $region13: #{up_conv3d_forward.2} parent=5 // pred_check
      %p117 = pneg %p116
    $region14: #{up_conv3d_forward.2} parent=5 // pred_check_branch
      %119 = sbr.rel (%p117) target = $region16
    $region15: #{up_conv3d_forward.2} parent=5 // pred_region
      // Predicated region
      $region17: #{up_conv3d_forward.2} parent=15 // pred_check
        %p120 = pneg %p43
      $region18: #{up_conv3d_forward.2} parent=15 // pred_check_branch
        %122 = sbr.rel (%p120) target = $region20
      $region19: #{up_conv3d_forward.2} parent=15 // pred_region
        %s123 = smul.u32 8, %s17
        %p124 = scmp.lt.s32.totalorder %s16, 1
        %s125 = scalar_select %p124, %s16, 1
        %p126 = scmp.lt.s32.totalorder %s123, 31
        %s127 = scalar_select %p126, %s123, 31
        %s128 = smul.addr %s125, 32
        %s129 = sadd.s32 %s127, %s128
        %s130 = smul.addr %s129, 4
        %s131 = scalar_lea.vmem %s0, %s130
        %s132 = smul.u32 8, %s17
      $region20: #{up_conv3d_forward.2} parent=15 // pred_fallthru
        _
    $region16: #{up_conv3d_forward.2} parent=5 // pred_fallthru
      _
    %p133 = scmp.le.s32.totalorder 1, %s9
    %p134 = scmp.lt.s32.totalorder %s9, 9
    %p135 = pnand %p133, %p134
    %p136 = pneg %p135
    // Predicated region
    $region21: #{up_conv3d_forward.2} parent=5 // pred_check
      _
    $region22: #{up_conv3d_forward.2} parent=5 // pred_check_branch
      %138 = sbr.rel (%p135) target = $region24
    $region23: #{up_conv3d_forward.2} parent=5 // pred_region
      %s139 = ssub.s32 %s9, 1
      %s140 = smul.u32 8, %s19
      %p141 = scmp.lt.s32.totalorder %s18, 1
      %s142 = scalar_select %p141, %s18, 1
      %p143 = scmp.lt.s32.totalorder %s140, 31
      %s144 = scalar_select %p143, %s140, 31
      %s145 = smul.addr %s142, 32
      %s146 = sadd.s32 %s144, %s145
      %s147 = smul.addr %s146, 4
      %s148 = scalar_lea.vmem %s0, %s147
      %p149 = pneg %p49
      %p150 = pneg %p46
      %p151 = pneg %p75
      %p152 = pneg %p72
      %p153 = scmp.lt.s32.totalorder %s18, 1
      %s154 = scalar_select %p153, %s18, 1
      %s155 = smul.addr %s154, 4
      %s156 = scalar_lea.vmem %s1, %s155
      %p157 = pneg %p101
      %p158 = pneg %p98
      %p159 = scmp.lt.s32.totalorder %s18, 1
      %s160 = scalar_select %p159, %s18, 1
      %s161 = smul.addr %s160, 4
      %s162 = scalar_lea.vmem %s2, %s161
      %s163 = smul.u32 8, %s19
      %p164 = scmp.lt.s32.totalorder %s18, 1
      %s165 = scalar_select %p164, %s18, 1
      %p166 = scmp.lt.s32.totalorder %s163, 31
      %s167 = scalar_select %p166, %s163, 31
      %s168 = smul.addr %s165, 32
      %s169 = sadd.s32 %s167, %s168
      %s170 = smul.addr %s169, 4
      %s171 = scalar_lea.vmem %s0, %s170
      %s172 = smul.u32 8, %s19
      %p173 = scmp.lt.s32.totalorder %s18, 1
      %s174 = scalar_select %p173, %s18, 1
      %s175 = smul.addr %s174, 4
      %s176 = scalar_lea.vmem %s1, %s175
      %p177 = scmp.lt.s32.totalorder %s18, 1
      %s178 = scalar_select %p177, %s18, 1
      %s179 = smul.addr %s178, 4
      %s180 = scalar_lea.vmem %s2, %s179
      %p181 = scmp.eq.s32.totalorder %s19, 0
      // Predicated region
      $region25: #{up_conv3d_forward.2} parent=23 // pred_check
        %p182 = pneg %p181
      $region26: #{up_conv3d_forward.2} parent=23 // pred_check_branch
        %184 = sbr.rel (%p182) target = $region28
      $region27: #{up_conv3d_forward.2} parent=23 // pred_region
        %vm185 = vcmask 27648
        %186 = vst.msk [vmem:[%s176] sm:$0xf] %vm185, 0.0
        %vm187 = vcmask 3072
        %188 = vst.msk [vmem:[%s180] sm:$0xf] %vm187, 0.0
      $region28: #{up_conv3d_forward.2} parent=23 // pred_fallthru
        _
      %v189 = vld [vmem:[%s171] sm:$0xff]
      %v190 = vld [vmem:[%s171 + $0x8] sm:$0xff]
      %v191 = vld [vmem:[%s171 + $0x10] sm:$0xff]
      %v192 = vld [vmem:[%s171 + $0x18] sm:$0xff]
      %v193 = vld [vmem:[%s176] sm:$0xf]
      %198 = vst [vmem:[#allocation1] ss:$2 sm:$0xff] %v189
      %s199 = scalar_lea.vmem [#allocation1], 16
      %200 = vst [vmem:[%s199] ss:$2 sm:$0xff] %v190
      %s201 = scalar_lea.vmem [#allocation1], 32
      %202 = vst [vmem:[%s201] ss:$2 sm:$0xff] %v191
      %s203 = scalar_lea.vmem [#allocation1], 48
      %204 = vst [vmem:[%s203] ss:$2 sm:$0xff] %v192
      %v205 = vld.sshfl [vmem:[#allocation1] sm:$0xff pattern:$0x75316420]
      %v206 = vld.sshfl [vmem:[#allocation1 + $0x8] sm:$0xff pattern:$0x75316420]
      %v207 = vld.sshfl [vmem:[#allocation1 + $0x10] sm:$0xff pattern:$0x75316420]
      %v208 = vld.sshfl [vmem:[#allocation1 + $0x18] sm:$0xff pattern:$0x75316420]
      %v209 = vld.sshfl [vmem:[#allocation1 + $0x20] sm:$0xff pattern:$0x75316420]
      %v210 = vld.sshfl [vmem:[#allocation1 + $0x28] sm:$0xff pattern:$0x75316420]
      %v211 = vld.sshfl [vmem:[#allocation1 + $0x30] sm:$0xff pattern:$0x75316420]
      %v212 = vld.sshfl [vmem:[#allocation1 + $0x38] sm:$0xff pattern:$0x75316420]
      %221 = vst [vmem:[#allocation1] ss:$2 sm:$0xff] %v189
      %s222 = scalar_lea.vmem [#allocation1], 16
      %223 = vst [vmem:[%s222] ss:$2 sm:$0xff] %v190
      %s224 = scalar_lea.vmem [#allocation1], 32
      %225 = vst [vmem:[%s224] ss:$2 sm:$0xff] %v191
      %s226 = scalar_lea.vmem [#allocation1], 48
      %227 = vst [vmem:[%s226] ss:$2 sm:$0xff] %v192
      %v228 = vld.sshfl [vmem:[#allocation1] sm:$0xff pattern:$0x75316420]
      %v229 = vld.sshfl [vmem:[#allocation1 + $0x8] sm:$0xff pattern:$0x75316420]
      %v230 = vld.sshfl [vmem:[#allocation1 + $0x10] sm:$0xff pattern:$0x75316420]
      %v231 = vld.sshfl [vmem:[#allocation1 + $0x18] sm:$0xff pattern:$0x75316420]
      %v232 = vld.sshfl [vmem:[#allocation1 + $0x20] sm:$0xff pattern:$0x75316420]
      %v233 = vld.sshfl [vmem:[#allocation1 + $0x28] sm:$0xff pattern:$0x75316420]
      %v234 = vld.sshfl [vmem:[#allocation1 + $0x30] sm:$0xff pattern:$0x75316420]
      %v235 = vld.sshfl [vmem:[#allocation1 + $0x38] sm:$0xff pattern:$0x75316420]
      %244 = vmatpush.xpose.msra.mxu0 0.0
      %245 = vmatpush.xpose.msra.mxu0 0.0
      %246 = vmatpush.xpose.msra.mxu0 0.0
      %247 = vmatpush.xpose.msra.mxu0 0.0
      %248 = vmatpush.xpose.msra.mxu0 0.0
      %249 = vmatpush.xpose.msra.mxu0 0.0
      %250 = vmatpush.xpose.msra.mxu0 0.0
      %251 = vmatpush.xpose.msra.mxu0 0.0
      %252 = vmatpush.xpose.msra.mxu0 0.0
      %253 = vmatpush.xpose.msra.mxu0 0.0
      %254 = vmatpush.xpose.msra.mxu0 0.0
      %255 = vmatpush.xpose.msra.mxu0 0.0
      %256 = vmatpush.xpose.msra.mxu0 0.0
      %257 = vmatpush.xpose.msra.mxu0 0.0
      %258 = vmatpush.xpose.msra.mxu0 0.0
      %259 = vmatpush.xpose.msra.mxu0 %v228
      %260 = vmatmul.f32.gmra.mxu0 %v205
      %v261 = vpop.f32.mrf.mxu0
      %v262 = vadd.f32 0.0, %v261
      %263 = vdwg.mxu0
      %264 = vmatpush.xpose.msra.mxu0 0.0
      %265 = vmatpush.xpose.msra.mxu0 0.0
      %266 = vmatpush.xpose.msra.mxu0 0.0
      %267 = vmatpush.xpose.msra.mxu0 0.0
      %268 = vmatpush.xpose.msra.mxu0 0.0
      %269 = vmatpush.xpose.msra.mxu0 0.0
      %270 = vmatpush.xpose.msra.mxu0 0.0
      %271 = vmatpush.xpose.msra.mxu0 0.0
      %272 = vmatpush.xpose.msra.mxu0 0.0
      %273 = vmatpush.xpose.msra.mxu0 0.0
      %274 = vmatpush.xpose.msra.mxu0 0.0
      %275 = vmatpush.xpose.msra.mxu0 0.0
      %276 = vmatpush.xpose.msra.mxu0 0.0
      %277 = vmatpush.xpose.msra.mxu0 0.0
      %278 = vmatpush.xpose.msra.mxu0 0.0
      %279 = vmatpush.xpose.msra.mxu0 %v229
      %280 = vmatmul.f32.gmra.mxu0 %v206
      %v281 = vpop.f32.mrf.mxu0
      %v282 = vadd.f32 %v262, %v281
      %283 = vdwg.mxu0
      %284 = vmatpush.xpose.msra.mxu0 0.0
      %285 = vmatpush.xpose.msra.mxu0 0.0
      %286 = vmatpush.xpose.msra.mxu0 0.0
      %287 = vmatpush.xpose.msra.mxu0 0.0
      %288 = vmatpush.xpose.msra.mxu0 0.0
      %289 = vmatpush.xpose.msra.mxu0 0.0
      %290 = vmatpush.xpose.msra.mxu0 0.0
      %291 = vmatpush.xpose.msra.mxu0 0.0
      %292 = vmatpush.xpose.msra.mxu0 0.0
      %293 = vmatpush.xpose.msra.mxu0 0.0
      %294 = vmatpush.xpose.msra.mxu0 0.0
      %295 = vmatpush.xpose.msra.mxu0 0.0
      %296 = vmatpush.xpose.msra.mxu0 0.0
      %297 = vmatpush.xpose.msra.mxu0 0.0
      %298 = vmatpush.xpose.msra.mxu0 0.0
      %299 = vmatpush.xpose.msra.mxu0 %v230
      %300 = vmatmul.f32.gmra.mxu0 %v207
      %v301 = vpop.f32.mrf.mxu0
      %v302 = vadd.f32 %v282, %v301
      %303 = vdwg.mxu0
      %304 = vmatpush.xpose.msra.mxu0 0.0
      %305 = vmatpush.xpose.msra.mxu0 0.0
      %306 = vmatpush.xpose.msra.mxu0 0.0
      %307 = vmatpush.xpose.msra.mxu0 0.0
      %308 = vmatpush.xpose.msra.mxu0 0.0
      %309 = vmatpush.xpose.msra.mxu0 0.0
      %310 = vmatpush.xpose.msra.mxu0 0.0
      %311 = vmatpush.xpose.msra.mxu0 0.0
      %312 = vmatpush.xpose.msra.mxu0 0.0
      %313 = vmatpush.xpose.msra.mxu0 0.0
      %314 = vmatpush.xpose.msra.mxu0 0.0
      %315 = vmatpush.xpose.msra.mxu0 0.0
      %316 = vmatpush.xpose.msra.mxu0 0.0
      %317 = vmatpush.xpose.msra.mxu0 0.0
      %318 = vmatpush.xpose.msra.mxu0 0.0
      %319 = vmatpush.xpose.msra.mxu0 %v231
      %320 = vmatmul.f32.gmra.mxu0 %v208
      %v321 = vpop.f32.mrf.mxu0
      %v322 = vadd.f32 %v302, %v321
      %323 = vdwg.mxu0
      %324 = vmatpush.xpose.msra.mxu0 0.0
      %325 = vmatpush.xpose.msra.mxu0 0.0
      %326 = vmatpush.xpose.msra.mxu0 0.0
      %327 = vmatpush.xpose.msra.mxu0 0.0
      %328 = vmatpush.xpose.msra.mxu0 0.0
      %329 = vmatpush.xpose.msra.mxu0 0.0
      %330 = vmatpush.xpose.msra.mxu0 0.0
      %331 = vmatpush.xpose.msra.mxu0 0.0
      %332 = vmatpush.xpose.msra.mxu0 0.0
      %333 = vmatpush.xpose.msra.mxu0 0.0
      %334 = vmatpush.xpose.msra.mxu0 0.0
      %335 = vmatpush.xpose.msra.mxu0 0.0
      %336 = vmatpush.xpose.msra.mxu0 0.0
      %337 = vmatpush.xpose.msra.mxu0 0.0
      %338 = vmatpush.xpose.msra.mxu0 0.0
      %339 = vmatpush.xpose.msra.mxu0 %v232
      %340 = vmatmul.f32.gmra.mxu0 %v209
      %v341 = vpop.f32.mrf.mxu0
      %v342 = vadd.f32 %v322, %v341
      %343 = vdwg.mxu0
      %344 = vmatpush.xpose.msra.mxu0 0.0
      %345 = vmatpush.xpose.msra.mxu0 0.0
      %346 = vmatpush.xpose.msra.mxu0 0.0
      %347 = vmatpush.xpose.msra.mxu0 0.0
      %348 = vmatpush.xpose.msra.mxu0 0.0
      %349 = vmatpush.xpose.msra.mxu0 0.0
      %350 = vmatpush.xpose.msra.mxu0 0.0
      %351 = vmatpush.xpose.msra.mxu0 0.0
      %352 = vmatpush.xpose.msra.mxu0 0.0
      %353 = vmatpush.xpose.msra.mxu0 0.0
      %354 = vmatpush.xpose.msra.mxu0 0.0
      %355 = vmatpush.xpose.msra.mxu0 0.0
      %356 = vmatpush.xpose.msra.mxu0 0.0
      %357 = vmatpush.xpose.msra.mxu0 0.0
      %358 = vmatpush.xpose.msra.mxu0 0.0
      %359 = vmatpush.xpose.msra.mxu0 %v233
      %360 = vmatmul.f32.gmra.mxu0 %v210
      %v361 = vpop.f32.mrf.mxu0
      %v362 = vadd.f32 %v342, %v361
      %363 = vdwg.mxu0
      %364 = vmatpush.xpose.msra.mxu0 0.0
      %365 = vmatpush.xpose.msra.mxu0 0.0
      %366 = vmatpush.xpose.msra.mxu0 0.0
      %367 = vmatpush.xpose.msra.mxu0 0.0
      %368 = vmatpush.xpose.msra.mxu0 0.0
      %369 = vmatpush.xpose.msra.mxu0 0.0
      %370 = vmatpush.xpose.msra.mxu0 0.0
      %371 = vmatpush.xpose.msra.mxu0 0.0
      %372 = vmatpush.xpose.msra.mxu0 0.0
      %373 = vmatpush.xpose.msra.mxu0 0.0
      %374 = vmatpush.xpose.msra.mxu0 0.0
      %375 = vmatpush.xpose.msra.mxu0 0.0
      %376 = vmatpush.xpose.msra.mxu0 0.0
      %377 = vmatpush.xpose.msra.mxu0 0.0
      %378 = vmatpush.xpose.msra.mxu0 0.0
      %379 = vmatpush.xpose.msra.mxu0 %v234
      %380 = vmatmul.f32.gmra.mxu0 %v211
      %v381 = vpop.f32.mrf.mxu0
      %v382 = vadd.f32 %v362, %v381
      %383 = vdwg.mxu0
      %384 = vmatpush.xpose.msra.mxu0 0.0
      %385 = vmatpush.xpose.msra.mxu0 0.0
      %386 = vmatpush.xpose.msra.mxu0 0.0
      %387 = vmatpush.xpose.msra.mxu0 0.0
      %388 = vmatpush.xpose.msra.mxu0 0.0
      %389 = vmatpush.xpose.msra.mxu0 0.0
      %390 = vmatpush.xpose.msra.mxu0 0.0
      %391 = vmatpush.xpose.msra.mxu0 0.0
      %392 = vmatpush.xpose.msra.mxu0 0.0
      %393 = vmatpush.xpose.msra.mxu0 0.0
      %394 = vmatpush.xpose.msra.mxu0 0.0
      %395 = vmatpush.xpose.msra.mxu0 0.0
      %396 = vmatpush.xpose.msra.mxu0 0.0
      %397 = vmatpush.xpose.msra.mxu0 0.0
      %398 = vmatpush.xpose.msra.mxu0 0.0
      %399 = vmatpush.xpose.msra.mxu0 %v235
      %400 = vmatmul.f32.gmra.mxu0 %v212
      %v401 = vpop.f32.mrf.mxu0
      %v402 = vadd.f32 %v382, %v401
      %403 = vdwg.mxu0
      %v404 = vadd.f32 %v193, %v402
      %vm405 = vcmask 27648
      %406 = vst.msk [vmem:[%s176] sm:$0xf] %vm405, %v404
      %v407 = vld [vmem:[%s180] sm:$0xf]
      %408 = vst [vmem:[#allocation1] ss:$2 sm:$0xff] %v189
      %s409 = scalar_lea.vmem [#allocation1], 16
      %410 = vst [vmem:[%s409] ss:$2 sm:$0xff] %v190
      %s411 = scalar_lea.vmem [#allocation1], 32
      %412 = vst [vmem:[%s411] ss:$2 sm:$0xff] %v191
      %s413 = scalar_lea.vmem [#allocation1], 48
      %414 = vst [vmem:[%s413] ss:$2 sm:$0xff] %v192
      %v415 = vld.sshfl [vmem:[#allocation1] sm:$0xff pattern:$0x75316420]
      %v416 = vld.sshfl [vmem:[#allocation1 + $0x8] sm:$0xff pattern:$0x75316420]
      %v417 = vld.sshfl [vmem:[#allocation1 + $0x10] sm:$0xff pattern:$0x75316420]
      %v418 = vld.sshfl [vmem:[#allocation1 + $0x18] sm:$0xff pattern:$0x75316420]
      %v419 = vld.sshfl [vmem:[#allocation1 + $0x20] sm:$0xff pattern:$0x75316420]
      %v420 = vld.sshfl [vmem:[#allocation1 + $0x28] sm:$0xff pattern:$0x75316420]
      %v421 = vld.sshfl [vmem:[#allocation1 + $0x30] sm:$0xff pattern:$0x75316420]
      %v422 = vld.sshfl [vmem:[#allocation1 + $0x38] sm:$0xff pattern:$0x75316420]
      %vm431 = vcmask 1043456
      %v432 = vsel %vm431, %v415, 0.0
      %v433 = vsel %vm431, %v416, 0.0
      %v434 = vadd.f32 %v432, %v433
      %v435 = vsel %vm431, %v417, 0.0
      %v436 = vadd.f32 %v434, %v435
      %v437 = vsel %vm431, %v418, 0.0
      %v438 = vadd.f32 %v436, %v437
      %v439 = vsel %vm431, %v419, 0.0
      %v440 = vadd.f32 %v438, %v439
      %v441 = vsel %vm431, %v420, 0.0
      %v442 = vadd.f32 %v440, %v441
      %v443 = vsel %vm431, %v421, 0.0
      %v444 = vadd.f32 %v442, %v443
      %v445 = vsel %vm431, %v422, 0.0
      %v446 = vadd.f32 %v444, %v445
      %447 = vadd.xlane.f32.xlu0 %v446
      %v448 = vpop.xlane.xlu0 %447
      %v449 = vadd.f32 %v407, %v448
      %vm450 = vcmask 3072
      %451 = vst.msk [vmem:[%s180] sm:$0xf] %vm450, %v449
      %p452 = scmp.lt.s32.totalorder %s18, 1
      %s453 = scalar_select %p452, %s18, 1
      %s454 = smul.addr %s453, 4
      %s455 = scalar_lea.vmem %s1, %s454
      %p456 = scmp.lt.s32.totalorder %s18, 1
      %s457 = scalar_select %p456, %s18, 1
      %s458 = smul.addr %s457, 4
      %s459 = scalar_lea.vmem %s2, %s458
      // Predicated region
      $region29: #{up_conv3d_forward.2} parent=23 // pred_check
        %p460 = pneg %p72
      $region30: #{up_conv3d_forward.2} parent=23 // pred_check_branch
        %462 = sbr.rel (%p460) target = $region32
      $region31: #{up_conv3d_forward.2} parent=23 // pred_region
        _
      $region32: #{up_conv3d_forward.2} parent=23 // pred_fallthru
        _
      // Predicated region
      $region33: #{up_conv3d_forward.2} parent=23 // pred_check
        %p463 = pneg %p98
      $region34: #{up_conv3d_forward.2} parent=23 // pred_check_branch
        %465 = sbr.rel (%p463) target = $region36
      $region35: #{up_conv3d_forward.2} parent=23 // pred_region
        _
      $region36: #{up_conv3d_forward.2} parent=23 // pred_fallthru
        _
    $region24: #{up_conv3d_forward.2} parent=5 // pred_fallthru
      _
    %p466 = scmp.le.s32.totalorder 2, %s9
    // Predicated region
    $region37: #{up_conv3d_forward.2} parent=5 // pred_check
      %p467 = pneg %p466
    $region38: #{up_conv3d_forward.2} parent=5 // pred_check_branch
      %469 = sbr.rel (%p467) target = $region40
    $region39: #{up_conv3d_forward.2} parent=5 // pred_region
      %s470 = ssub.s32 %s9, 2
      // Predicated region
      $region41: #{up_conv3d_forward.2} parent=39 // pred_check
        %p471 = pneg %p78
      $region42: #{up_conv3d_forward.2} parent=39 // pred_check_branch
        %473 = sbr.rel (%p471) target = $region44
      $region43: #{up_conv3d_forward.2} parent=39 // pred_region
        %p474 = scmp.lt.s32.totalorder %s20, 1
        %s475 = scalar_select %p474, %s20, 1
        %s476 = smul.addr %s475, 4
        %s477 = scalar_lea.vmem %s1, %s476
      $region44: #{up_conv3d_forward.2} parent=39 // pred_fallthru
        _
      // Predicated region
      $region45: #{up_conv3d_forward.2} parent=39 // pred_check
        %p478 = pneg %p104
      $region46: #{up_conv3d_forward.2} parent=39 // pred_check_branch
        %480 = sbr.rel (%p478) target = $region48
      $region47: #{up_conv3d_forward.2} parent=39 // pred_region
        %p481 = scmp.lt.s32.totalorder %s20, 1
        %s482 = scalar_select %p481, %s20, 1
        %s483 = smul.addr %s482, 4
        %s484 = scalar_lea.vmem %s2, %s483
      $region48: #{up_conv3d_forward.2} parent=39 // pred_fallthru
        _
    $region40: #{up_conv3d_forward.2} parent=5 // pred_fallthru
      _
  $region6: #{up_conv3d_forward.2} parent=0 // loop_footer
    %s13 = sadd.s32 1, %s9
  $region7: #{up_conv3d_forward.2} parent=0 // loop_footer_branch
    %8 = sbr.rel target = $region3
  $region8: #{up_conv3d_forward.2} parent=0 // loop_exit
    _

// kernel: up_conv3d_forward.3
$region0: #{up_conv3d_forward.3}
  #allocation0 [shape = 'u32[]', space=smem, size = 0x4, offset = 0x4, fixed_abs, tag = 'smem constant byte address 0x4 - core index']
  #allocation1 [shape = 'u32[72,128]{1,0:T(1,128)}', space=vmem, size = 0x9000, scoped, tag = 'internal scratch']
  %s0 = inlined_call_operand.vmem [shape: f32[2,4,4096], index: 0, kind: input, shape index: {}]
  %s1 = inlined_call_operand.vmem [shape: f32[2,4,64], index: 1, kind: input, shape index: {}]
  %s2 = inlined_call_operand.vmem [shape: f32[2,64,1], index: 2, kind: input, shape index: {}]
  %s3 = inlined_call_operand.vmem [shape: f32[2,64,4096], index: 3, kind: output, shape index: {}]
  %s4 = sld [smem:[#allocation0]]
  $region64: #{up_conv3d_forward.3} parent=0
    _
  %s6 = ssub.s32 1, %s4
  %s7 = scalar_select 0, %s6, %s4
  $region1: #{up_conv3d_forward.3} parent=0
    #allocation2 [shape = 'u8[524288]{0}', space=vmem, size = 0x80000, scoped, tag = 'output window, operand 0']
    loop: start=0, step=1, limit=10
    $region2: #{up_conv3d_forward.3} parent=1 // loop_pre_header
      _
    $region3: #{up_conv3d_forward.3} parent=1 // loop_header
      %s9 = sphi 0, %s13
      %p10 = scmp.ge.s32.totalorder %s9, 10
      %s16 = sphi 0, %s28
      %s17 = sphi 0, %s24
      %s18 = sphi 0, %s16
      %s19 = sphi 0, %s17
      %s20 = sphi 0, %s18
      %s21 = sphi 0, %s19
      %s33 = sphi 0, %s35
      %s36 = sphi 0, %s33
      %s37 = sphi 0, %s36
      %s53 = sphi 0, %s37
      %s59 = sphi 0, %s61
      %s62 = sphi 0, %s59
      %s63 = sphi 0, %s62
      %s79 = sphi 0, %s63
      %s85 = sphi 0, %s87
      %s88 = sphi 0, %s85
      %s89 = sphi 0, %s88
      %s105 = sphi 0, %s89
      %s113 = sphi 0, %s115
      %s116 = sphi 0, %s113
      %s117 = sphi 0, %s116
      %s133 = sphi 0, %s117
    $region4: #{up_conv3d_forward.3} parent=1 // loop_header_branch
      %12 = sbr.rel (%p10) target = $region8
    $region5: #{up_conv3d_forward.3} parent=1 // loop_body
      %s14 = ssub.s32 %s9, 1
      %s15 = ssub.s32 %s9, 2
      %s22 = sadd.s32 1, %s17
      %p23 = scmp.ge.s32.totalorder %s22, 4
      %s24 = scalar_select %p23, 0, %s22
      %s25 = sadd.s32 1, %s16
      %s26 = scalar_select %p23, %s25, %s16
      %p27 = scmp.ge.s32.totalorder %s26, 2
      %s28 = scalar_select %p27, 0, %s26
      %s29 = ssub.s32 %s16, %s28
      %s30 = ssub.s32 %s17, %s24
      %s31 = sor.u32 %s29, %s30
      %p32 = scmp.eq.s32.totalorder %s31, 0
      %s34 = sadd.s32 %s33, 1
      %s35 = scalar_select %p32, %s33, %s34
      %p38 = pneg %p32
      %p39 = scmp.eq.s32.totalorder %s9, 7
      %p40 = por %p38, %p39
      %p41 = scmp.ne.s32.totalorder %s33, %s36
      %p42 = scmp.eq.s32.totalorder %s9, 0
      %p43 = por %p41, %p42
      %p44 = scmp.ne.s32.totalorder %s33, %s36
      %p45 = scmp.eq.s32.totalorder %s14, 7
      %p46 = por %p44, %p45
      %p47 = scmp.ne.s32.totalorder %s36, %s37
      %p48 = scmp.eq.s32.totalorder %s14, 0
      %p49 = por %p47, %p48
      %p50 = scmp.ne.s32.totalorder %s36, %s37
      %p51 = scmp.eq.s32.totalorder %s15, 7
      %p52 = por %p50, %p51
      %p54 = scmp.ne.s32.totalorder %s37, %s53
      %p55 = scmp.eq.s32.totalorder %s15, 0
      %p56 = por %p54, %p55
      %s57 = ssub.s32 %s16, %s28
      %p58 = scmp.eq.s32.totalorder %s57, 0
      %s60 = sadd.s32 %s59, 1
      %s61 = scalar_select %p58, %s59, %s60
      %p64 = pneg %p58
      %p65 = scmp.eq.s32.totalorder %s9, 7
      %p66 = por %p64, %p65
      %p67 = scmp.ne.s32.totalorder %s59, %s62
      %p68 = scmp.eq.s32.totalorder %s9, 0
      %p69 = por %p67, %p68
      %p70 = scmp.ne.s32.totalorder %s59, %s62
      %p71 = scmp.eq.s32.totalorder %s14, 7
      %p72 = por %p70, %p71
      %p73 = scmp.ne.s32.totalorder %s62, %s63
      %p74 = scmp.eq.s32.totalorder %s14, 0
      %p75 = por %p73, %p74
      %p76 = scmp.ne.s32.totalorder %s62, %s63
      %p77 = scmp.eq.s32.totalorder %s15, 7
      %p78 = por %p76, %p77
      %p80 = scmp.ne.s32.totalorder %s63, %s79
      %p81 = scmp.eq.s32.totalorder %s15, 0
      %p82 = por %p80, %p81
      %s83 = ssub.s32 %s16, %s28
      %p84 = scmp.eq.s32.totalorder %s83, 0
      %s86 = sadd.s32 %s85, 1
      %s87 = scalar_select %p84, %s85, %s86
      %p90 = pneg %p84
      %p91 = scmp.eq.s32.totalorder %s9, 7
      %p92 = por %p90, %p91
      %p93 = scmp.ne.s32.totalorder %s85, %s88
      %p94 = scmp.eq.s32.totalorder %s9, 0
      %p95 = por %p93, %p94
      %p96 = scmp.ne.s32.totalorder %s85, %s88
      %p97 = scmp.eq.s32.totalorder %s14, 7
      %p98 = por %p96, %p97
      %p99 = scmp.ne.s32.totalorder %s88, %s89
      %p100 = scmp.eq.s32.totalorder %s14, 0
      %p101 = por %p99, %p100
      %p102 = scmp.ne.s32.totalorder %s88, %s89
      %p103 = scmp.eq.s32.totalorder %s15, 7
      %p104 = por %p102, %p103
      %p106 = scmp.ne.s32.totalorder %s89, %s105
      %p107 = scmp.eq.s32.totalorder %s15, 0
      %p108 = por %p106, %p107
      %s109 = ssub.s32 %s16, %s28
      %s110 = ssub.s32 %s17, %s24
      %s111 = sor.u32 %s109, %s110
      %p112 = scmp.eq.s32.totalorder %s111, 0
      %s114 = sadd.s32 %s113, 1
      %s115 = scalar_select %p112, %s113, %s114
      %p118 = pneg %p112
      %p119 = scmp.eq.s32.totalorder %s9, 7
      %p120 = por %p118, %p119
      %p121 = scmp.ne.s32.totalorder %s113, %s116
      %p122 = scmp.eq.s32.totalorder %s9, 0
      %p123 = por %p121, %p122
      %p124 = scmp.ne.s32.totalorder %s113, %s116
      %p125 = scmp.eq.s32.totalorder %s14, 7
      %p126 = por %p124, %p125
      %p127 = scmp.ne.s32.totalorder %s116, %s117
      %p128 = scmp.eq.s32.totalorder %s14, 0
      %p129 = por %p127, %p128
      %p130 = scmp.ne.s32.totalorder %s116, %s117
      %p131 = scmp.eq.s32.totalorder %s15, 7
      %p132 = por %p130, %p131
      %p134 = scmp.ne.s32.totalorder %s117, %s133
      %p135 = scmp.eq.s32.totalorder %s15, 0
      %p136 = por %p134, %p135
      %p137 = scmp.le.s32.totalorder 1, %s9
      %p138 = scmp.lt.s32.totalorder %s9, 9
      %p139 = pnand %p137, %p138
      %p140 = pneg %p139
      // Predicated region
      $region9: #{up_conv3d_forward.3} parent=5 // pred_check
        _
      $region10: #{up_conv3d_forward.3} parent=5 // pred_check_branch
        %142 = sbr.rel (%p139) target = $region12
      $region11: #{up_conv3d_forward.3} parent=5 // pred_region
        %s143 = ssub.s32 %s9, 1
      $region12: #{up_conv3d_forward.3} parent=5 // pred_fallthru
        _
      %p144 = scmp.lt.s32.totalorder %s9, 8
      // Predicated region
      $region13: #{up_conv3d_forward.3} parent=5 // pred_check
        %p145 = pneg %p144
      $region14: #{up_conv3d_forward.3} parent=5 // pred_check_branch
        %147 = sbr.rel (%p145) target = $region16
      $region15: #{up_conv3d_forward.3} parent=5 // pred_region
        // Predicated region
        $region17: #{up_conv3d_forward.3} parent=15 // pred_check
          %p148 = pneg %p43
        $region18: #{up_conv3d_forward.3} parent=15 // pred_check_branch
          %150 = sbr.rel (%p148) target = $region20
        $region19: #{up_conv3d_forward.3} parent=15 // pred_region
          %s151 = smul.u32 8, %s17
          %p152 = scmp.lt.s32.totalorder %s16, 1
          %s153 = scalar_select %p152, %s16, 1
          %p154 = scmp.lt.s32.totalorder %s151, 31
          %s155 = scalar_select %p154, %s151, 31
          %s156 = smul.addr %s153, 32
          %s157 = sadd.s32 %s155, %s156
          %s158 = smul.addr %s157, 4
          %s159 = scalar_lea.vmem %s0, %s158
          %s160 = smul.u32 8, %s17
        $region20: #{up_conv3d_forward.3} parent=15 // pred_fallthru
          _
        // Predicated region
        $region21: #{up_conv3d_forward.3} parent=15 // pred_check
          %p161 = pneg %p69
        $region22: #{up_conv3d_forward.3} parent=15 // pred_check_branch
          %163 = sbr.rel (%p161) target = $region24
        $region23: #{up_conv3d_forward.3} parent=15 // pred_region
          %p164 = scmp.lt.s32.totalorder %s16, 1
          %s165 = scalar_select %p164, %s16, 1
          %s166 = smul.addr %s165, 4
          %s167 = scalar_lea.vmem %s1, %s166
        $region24: #{up_conv3d_forward.3} parent=15 // pred_fallthru
          _
        // Predicated region
        $region25: #{up_conv3d_forward.3} parent=15 // pred_check
          %p168 = pneg %p95
        $region26: #{up_conv3d_forward.3} parent=15 // pred_check_branch
          %170 = sbr.rel (%p168) target = $region28
        $region27: #{up_conv3d_forward.3} parent=15 // pred_region
          %p171 = scmp.lt.s32.totalorder %s16, 1
          %s172 = scalar_select %p171, %s16, 1
          %s173 = smul.addr %s172, 8
          %s174 = smul.addr %s173, 8
          %s175 = scalar_lea.vmem %s2, %s174
        $region28: #{up_conv3d_forward.3} parent=15 // pred_fallthru
          _
      $region16: #{up_conv3d_forward.3} parent=5 // pred_fallthru
        _
      %p176 = scmp.le.s32.totalorder 1, %s9
      %p177 = scmp.lt.s32.totalorder %s9, 9
      %p178 = pnand %p176, %p177
      %p179 = pneg %p178
      // Predicated region
      $region29: #{up_conv3d_forward.3} parent=5 // pred_check
        _
      $region30: #{up_conv3d_forward.3} parent=5 // pred_check_branch
        %181 = sbr.rel (%p178) target = $region32
      $region31: #{up_conv3d_forward.3} parent=5 // pred_region
        %s182 = ssub.s32 %s9, 1
        %s183 = smul.u32 8, %s19
        %p184 = scmp.lt.s32.totalorder %s18, 1
        %s185 = scalar_select %p184, %s18, 1
        %p186 = scmp.lt.s32.totalorder %s183, 31
        %s187 = scalar_select %p186, %s183, 31
        %s188 = smul.addr %s185, 32
        %s189 = sadd.s32 %s187, %s188
        %s190 = smul.addr %s189, 4
        %s191 = scalar_lea.vmem %s0, %s190
        %p192 = pneg %p49
        %p193 = pneg %p46
        %p194 = scmp.lt.s32.totalorder %s18, 1
        %s195 = scalar_select %p194, %s18, 1
        %s196 = smul.addr %s195, 4
        %s197 = scalar_lea.vmem %s1, %s196
        %p198 = pneg %p75
        %p199 = pneg %p72
        %p200 = scmp.lt.s32.totalorder %s18, 1
        %s201 = scalar_select %p200, %s18, 1
        %s202 = smul.addr %s201, 8
        %s203 = smul.addr %s202, 8
        %s204 = scalar_lea.vmem %s2, %s203
        %p205 = pneg %p101
        %p206 = pneg %p98
        %p207 = pneg %p129
        %p208 = pneg %p126
        %s209 = sand.u32 %s116, 1
        %s210 = sand.u32 %s116, 1
        %s211 = smul.addr %s210, 512
        %s212 = scalar_lea.vmem [#allocation2], %s211
        %s213 = smul.u32 8, %s19
        %p214 = scmp.lt.s32.totalorder %s18, 1
        %s215 = scalar_select %p214, %s18, 1
        %p216 = scmp.lt.s32.totalorder %s213, 31
        %s217 = scalar_select %p216, %s213, 31
        %s218 = smul.addr %s215, 32
        %s219 = sadd.s32 %s217, %s218
        %s220 = smul.addr %s219, 4
        %s221 = scalar_lea.vmem %s0, %s220
        %s222 = smul.u32 8, %s19
        %p223 = scmp.lt.s32.totalorder %s18, 1
        %s224 = scalar_select %p223, %s18, 1
        %s225 = smul.addr %s224, 4
        %s226 = scalar_lea.vmem %s1, %s225
        %p227 = scmp.lt.s32.totalorder %s18, 1
        %s228 = scalar_select %p227, %s18, 1
        %s229 = smul.addr %s228, 8
        %s230 = smul.addr %s229, 8
        %s231 = scalar_lea.vmem %s2, %s230
        %s232 = smul.u32 8, %s19
        %v233 = vld [vmem:[%s221] sm:$0xff]
        %v234 = vld [vmem:[%s221 + $0x8] sm:$0xff]
        %v235 = vld [vmem:[%s221 + $0x10] sm:$0xff]
        %v236 = vld [vmem:[%s221 + $0x18] sm:$0xff]
        %v237 = vld [vmem:[%s226] sm:$0xf]
        %238 = vxpose.xlu0.b32.start [1/16] %v237, 128
        %239 = vxpose.xlu0.b32.cont [2/16] 0.0, 128
        %240 = vxpose.xlu0.b32.cont [3/16] 0.0, 128
        %241 = vxpose.xlu0.b32.cont [4/16] 0.0, 128
        %242 = vxpose.xlu0.b32.cont [5/16] 0.0, 128
        %243 = vxpose.xlu0.b32.cont [6/16] 0.0, 128
        %244 = vxpose.xlu0.b32.cont [7/16] 0.0, 128
        %245 = vxpose.xlu0.b32.cont [8/16] 0.0, 128
        %246 = vxpose.xlu0.b32.cont [9/16] 0.0, 128
        %247 = vxpose.xlu0.b32.cont [10/16] 0.0, 128
        %248 = vxpose.xlu0.b32.cont [11/16] 0.0, 128
        %249 = vxpose.xlu0.b32.cont [12/16] 0.0, 128
        %250 = vxpose.xlu0.b32.cont [13/16] 0.0, 128
        %251 = vxpose.xlu0.b32.cont [14/16] 0.0, 128
        %252 = vxpose.xlu0.b32.cont [15/16] 0.0, 128
        %253 = vxpose.xlu0.b32.end [16/16] 0.0, 128
        %v254 = vpop.trf.xlu0
        %v255 = vpop.trf.xlu0
        %v256 = vpop.trf.xlu0
        %v257 = vpop.trf.xlu0
        %v258 = vpop.trf.xlu0
        %v259 = vpop.trf.xlu0
        %v260 = vpop.trf.xlu0
        %v261 = vpop.trf.xlu0
        %v262 = vpop.trf.xlu0
        %v263 = vpop.trf.xlu0
        %v264 = vpop.trf.xlu0
        %v265 = vpop.trf.xlu0
        %v266 = vpop.trf.xlu0
        %v267 = vpop.trf.xlu0
        %v268 = vpop.trf.xlu0
        %v269 = vpop.trf.xlu0
        %274 = vst [vmem:[#allocation1] ss:$2 sm:$0xff] %v233
        %s275 = scalar_lea.vmem [#allocation1], 16
        %276 = vst [vmem:[%s275] ss:$2 sm:$0xff] %v234
        %s277 = scalar_lea.vmem [#allocation1], 32
        %278 = vst [vmem:[%s277] ss:$2 sm:$0xff] %v235
        %s279 = scalar_lea.vmem [#allocation1], 48
        %280 = vst [vmem:[%s279] ss:$2 sm:$0xff] %v236
        %v281 = vld.sshfl [vmem:[#allocation1] sm:$0xff pattern:$0x75316420]
        %v282 = vld.sshfl [vmem:[#allocation1 + $0x8] sm:$0xff pattern:$0x75316420]
        %v283 = vld.sshfl [vmem:[#allocation1 + $0x10] sm:$0xff pattern:$0x75316420]
        %v284 = vld.sshfl [vmem:[#allocation1 + $0x18] sm:$0xff pattern:$0x75316420]
        %v285 = vld.sshfl [vmem:[#allocation1 + $0x20] sm:$0xff pattern:$0x75316420]
        %v286 = vld.sshfl [vmem:[#allocation1 + $0x28] sm:$0xff pattern:$0x75316420]
        %v287 = vld.sshfl [vmem:[#allocation1 + $0x30] sm:$0xff pattern:$0x75316420]
        %v288 = vld.sshfl [vmem:[#allocation1 + $0x38] sm:$0xff pattern:$0x75316420]
        %vm289 = vcmask 31744
        %v291 = vsel %vm289, %v254, 0
        %v294 = vsel %vm289, %v255, 0
        %v297 = vsel %vm289, %v256, 0
        %v300 = vsel %vm289, %v257, 0
        %v303 = vsel %vm289, %v258, 0
        %v306 = vsel %vm289, %v259, 0
        %v309 = vsel %vm289, %v260, 0
        %v312 = vsel %vm289, %v261, 0
        %vm314 = vcmask 1043456
        %v315 = vsel %vm314, %v281, 0
        %v317 = vsel %vm314, %v282, 0
        %v319 = vsel %vm314, %v283, 0
        %v321 = vsel %vm314, %v284, 0
        %v323 = vsel %vm314, %v285, 0
        %v325 = vsel %vm314, %v286, 0
        %v327 = vsel %vm314, %v287, 0
        %v329 = vsel %vm314, %v288, 0
        %331 = vmatpush.msra.mxu0 0.0
        %332 = vmatpush.msra.mxu0 0.0
        %333 = vmatpush.msra.mxu0 0.0
        %334 = vmatpush.msra.mxu0 0.0
        %335 = vmatpush.msra.mxu0 0.0
        %336 = vmatpush.msra.mxu0 0.0
        %337 = vmatpush.msra.mxu0 0.0
        %338 = vmatpush.msra.mxu0 0.0
        %339 = vmatpush.msra.mxu0 0.0
        %340 = vmatpush.msra.mxu0 0.0
        %341 = vmatpush.msra.mxu0 0.0
        %342 = vmatpush.msra.mxu0 0.0
        %343 = vmatpush.msra.mxu0 0.0
        %344 = vmatpush.msra.mxu0 0.0
        %345 = vmatpush.msra.mxu0 0.0
        %346 = vmatpush.msra.mxu0 %v315
        %347 = vmatmul.f32.gmra.mxu0 %v291
        %v348 = vpop.f32.mrf.mxu0
        %v349 = vadd.f32 0.0, %v348
        %350 = vmatmul.f32.gmra.mxu0 %v294
        %v351 = vpop.f32.mrf.mxu0
        %v352 = vadd.f32 0.0, %v351
        %353 = vmatmul.f32.gmra.mxu0 %v297
        %v354 = vpop.f32.mrf.mxu0
        %v355 = vadd.f32 0.0, %v354
        %356 = vmatmul.f32.gmra.mxu0 %v300
        %v357 = vpop.f32.mrf.mxu0
        %v358 = vadd.f32 0.0, %v357
        %359 = vmatmul.f32.gmra.mxu0 %v303
        %v360 = vpop.f32.mrf.mxu0
        %v361 = vadd.f32 0.0, %v360
        %362 = vmatmul.f32.gmra.mxu0 %v306
        %v363 = vpop.f32.mrf.mxu0
        %v364 = vadd.f32 0.0, %v363
        %365 = vmatmul.f32.gmra.mxu0 %v309
        %v366 = vpop.f32.mrf.mxu0
        %v367 = vadd.f32 0.0, %v366
        %368 = vmatmul.f32.gmra.mxu0 %v312
        %v369 = vpop.f32.mrf.mxu0
        %v370 = vadd.f32 0.0, %v369
        %371 = vdwg.mxu0
        %372 = vmatpush.msra.mxu0 0.0
        %373 = vmatpush.msra.mxu0 0.0
        %374 = vmatpush.msra.mxu0 0.0
        %375 = vmatpush.msra.mxu0 0.0
        %376 = vmatpush.msra.mxu0 0.0
        %377 = vmatpush.msra.mxu0 0.0
        %378 = vmatpush.msra.mxu0 0.0
        %379 = vmatpush.msra.mxu0 0.0
        %380 = vmatpush.msra.mxu0 0.0
        %381 = vmatpush.msra.mxu0 0.0
        %382 = vmatpush.msra.mxu0 0.0
        %383 = vmatpush.msra.mxu0 0.0
        %384 = vmatpush.msra.mxu0 0.0
        %385 = vmatpush.msra.mxu0 0.0
        %386 = vmatpush.msra.mxu0 0.0
        %387 = vmatpush.msra.mxu0 %v317
        %388 = vmatmul.f32.gmra.mxu0 %v291
        %v389 = vpop.f32.mrf.mxu0
        %v390 = vadd.f32 0.0, %v389
        %391 = vmatmul.f32.gmra.mxu0 %v294
        %v392 = vpop.f32.mrf.mxu0
        %v393 = vadd.f32 0.0, %v392
        %394 = vmatmul.f32.gmra.mxu0 %v297
        %v395 = vpop.f32.mrf.mxu0
        %v396 = vadd.f32 0.0, %v395
        %397 = vmatmul.f32.gmra.mxu0 %v300
        %v398 = vpop.f32.mrf.mxu0
        %v399 = vadd.f32 0.0, %v398
        %400 = vmatmul.f32.gmra.mxu0 %v303
        %v401 = vpop.f32.mrf.mxu0
        %v402 = vadd.f32 0.0, %v401
        %403 = vmatmul.f32.gmra.mxu0 %v306
        %v404 = vpop.f32.mrf.mxu0
        %v405 = vadd.f32 0.0, %v404
        %406 = vmatmul.f32.gmra.mxu0 %v309
        %v407 = vpop.f32.mrf.mxu0
        %v408 = vadd.f32 0.0, %v407
        %409 = vmatmul.f32.gmra.mxu0 %v312
        %v410 = vpop.f32.mrf.mxu0
        %v411 = vadd.f32 0.0, %v410
        %412 = vdwg.mxu0
        %413 = vmatpush.msra.mxu0 0.0
        %414 = vmatpush.msra.mxu0 0.0
        %415 = vmatpush.msra.mxu0 0.0
        %416 = vmatpush.msra.mxu0 0.0
        %417 = vmatpush.msra.mxu0 0.0
        %418 = vmatpush.msra.mxu0 0.0
        %419 = vmatpush.msra.mxu0 0.0
        %420 = vmatpush.msra.mxu0 0.0
        %421 = vmatpush.msra.mxu0 0.0
        %422 = vmatpush.msra.mxu0 0.0
        %423 = vmatpush.msra.mxu0 0.0
        %424 = vmatpush.msra.mxu0 0.0
        %425 = vmatpush.msra.mxu0 0.0
        %426 = vmatpush.msra.mxu0 0.0
        %427 = vmatpush.msra.mxu0 0.0
        %428 = vmatpush.msra.mxu0 %v319
        %429 = vmatmul.f32.gmra.mxu0 %v291
        %v430 = vpop.f32.mrf.mxu0
        %v431 = vadd.f32 0.0, %v430
        %432 = vmatmul.f32.gmra.mxu0 %v294
        %v433 = vpop.f32.mrf.mxu0
        %v434 = vadd.f32 0.0, %v433
        %435 = vmatmul.f32.gmra.mxu0 %v297
        %v436 = vpop.f32.mrf.mxu0
        %v437 = vadd.f32 0.0, %v436
        %438 = vmatmul.f32.gmra.mxu0 %v300
        %v439 = vpop.f32.mrf.mxu0
        %v440 = vadd.f32 0.0, %v439
        %441 = vmatmul.f32.gmra.mxu0 %v303
        %v442 = vpop.f32.mrf.mxu0
        %v443 = vadd.f32 0.0, %v442
        %444 = vmatmul.f32.gmra.mxu0 %v306
        %v445 = vpop.f32.mrf.mxu0
        %v446 = vadd.f32 0.0, %v445
        %447 = vmatmul.f32.gmra.mxu0 %v309
        %v448 = vpop.f32.mrf.mxu0
        %v449 = vadd.f32 0.0, %v448
        %450 = vmatmul.f32.gmra.mxu0 %v312
        %v451 = vpop.f32.mrf.mxu0
        %v452 = vadd.f32 0.0, %v451
        %453 = vdwg.mxu0
        %454 = vmatpush.msra.mxu0 0.0
        %455 = vmatpush.msra.mxu0 0.0
        %456 = vmatpush.msra.mxu0 0.0
        %457 = vmatpush.msra.mxu0 0.0
        %458 = vmatpush.msra.mxu0 0.0
        %459 = vmatpush.msra.mxu0 0.0
        %460 = vmatpush.msra.mxu0 0.0
        %461 = vmatpush.msra.mxu0 0.0
        %462 = vmatpush.msra.mxu0 0.0
        %463 = vmatpush.msra.mxu0 0.0
        %464 = vmatpush.msra.mxu0 0.0
        %465 = vmatpush.msra.mxu0 0.0
        %466 = vmatpush.msra.mxu0 0.0
        %467 = vmatpush.msra.mxu0 0.0
        %468 = vmatpush.msra.mxu0 0.0
        %469 = vmatpush.msra.mxu0 %v321
        %470 = vmatmul.f32.gmra.mxu0 %v291
        %v471 = vpop.f32.mrf.mxu0
        %v472 = vadd.f32 0.0, %v471
        %473 = vmatmul.f32.gmra.mxu0 %v294
        %v474 = vpop.f32.mrf.mxu0
        %v475 = vadd.f32 0.0, %v474
        %476 = vmatmul.f32.gmra.mxu0 %v297
        %v477 = vpop.f32.mrf.mxu0
        %v478 = vadd.f32 0.0, %v477
        %479 = vmatmul.f32.gmra.mxu0 %v300
        %v480 = vpop.f32.mrf.mxu0
        %v481 = vadd.f32 0.0, %v480
        %482 = vmatmul.f32.gmra.mxu0 %v303
        %v483 = vpop.f32.mrf.mxu0
        %v484 = vadd.f32 0.0, %v483
        %485 = vmatmul.f32.gmra.mxu0 %v306
        %v486 = vpop.f32.mrf.mxu0
        %v487 = vadd.f32 0.0, %v486
        %488 = vmatmul.f32.gmra.mxu0 %v309
        %v489 = vpop.f32.mrf.mxu0
        %v490 = vadd.f32 0.0, %v489
        %491 = vmatmul.f32.gmra.mxu0 %v312
        %v492 = vpop.f32.mrf.mxu0
        %v493 = vadd.f32 0.0, %v492
        %494 = vdwg.mxu0
        %495 = vmatpush.msra.mxu0 0.0
        %496 = vmatpush.msra.mxu0 0.0
        %497 = vmatpush.msra.mxu0 0.0
        %498 = vmatpush.msra.mxu0 0.0
        %499 = vmatpush.msra.mxu0 0.0
        %500 = vmatpush.msra.mxu0 0.0
        %501 = vmatpush.msra.mxu0 0.0
        %502 = vmatpush.msra.mxu0 0.0
        %503 = vmatpush.msra.mxu0 0.0
        %504 = vmatpush.msra.mxu0 0.0
        %505 = vmatpush.msra.mxu0 0.0
        %506 = vmatpush.msra.mxu0 0.0
        %507 = vmatpush.msra.mxu0 0.0
        %508 = vmatpush.msra.mxu0 0.0
        %509 = vmatpush.msra.mxu0 0.0
        %510 = vmatpush.msra.mxu0 %v323
        %511 = vmatmul.f32.gmra.mxu0 %v291
        %v512 = vpop.f32.mrf.mxu0
        %v513 = vadd.f32 0.0, %v512
        %514 = vmatmul.f32.gmra.mxu0 %v294
        %v515 = vpop.f32.mrf.mxu0
        %v516 = vadd.f32 0.0, %v515
        %517 = vmatmul.f32.gmra.mxu0 %v297
        %v518 = vpop.f32.mrf.mxu0
        %v519 = vadd.f32 0.0, %v518
        %520 = vmatmul.f32.gmra.mxu0 %v300
        %v521 = vpop.f32.mrf.mxu0
        %v522 = vadd.f32 0.0, %v521
        %523 = vmatmul.f32.gmra.mxu0 %v303
        %v524 = vpop.f32.mrf.mxu0
        %v525 = vadd.f32 0.0, %v524
        %526 = vmatmul.f32.gmra.mxu0 %v306
        %v527 = vpop.f32.mrf.mxu0
        %v528 = vadd.f32 0.0, %v527
        %529 = vmatmul.f32.gmra.mxu0 %v309
        %v530 = vpop.f32.mrf.mxu0
        %v531 = vadd.f32 0.0, %v530
        %532 = vmatmul.f32.gmra.mxu0 %v312
        %v533 = vpop.f32.mrf.mxu0
        %v534 = vadd.f32 0.0, %v533
        %535 = vdwg.mxu0
        %536 = vmatpush.msra.mxu0 0.0
        %537 = vmatpush.msra.mxu0 0.0
        %538 = vmatpush.msra.mxu0 0.0
        %539 = vmatpush.msra.mxu0 0.0
        %540 = vmatpush.msra.mxu0 0.0
        %541 = vmatpush.msra.mxu0 0.0
        %542 = vmatpush.msra.mxu0 0.0
        %543 = vmatpush.msra.mxu0 0.0
        %544 = vmatpush.msra.mxu0 0.0
        %545 = vmatpush.msra.mxu0 0.0
        %546 = vmatpush.msra.mxu0 0.0
        %547 = vmatpush.msra.mxu0 0.0
        %548 = vmatpush.msra.mxu0 0.0
        %549 = vmatpush.msra.mxu0 0.0
        %550 = vmatpush.msra.mxu0 0.0
        %551 = vmatpush.msra.mxu0 %v325
        %552 = vmatmul.f32.gmra.mxu0 %v291
        %v553 = vpop.f32.mrf.mxu0
        %v554 = vadd.f32 0.0, %v553
        %555 = vmatmul.f32.gmra.mxu0 %v294
        %v556 = vpop.f32.mrf.mxu0
        %v557 = vadd.f32 0.0, %v556
        %558 = vmatmul.f32.gmra.mxu0 %v297
        %v559 = vpop.f32.mrf.mxu0
        %v560 = vadd.f32 0.0, %v559
        %561 = vmatmul.f32.gmra.mxu0 %v300
        %v562 = vpop.f32.mrf.mxu0
        %v563 = vadd.f32 0.0, %v562
        %564 = vmatmul.f32.gmra.mxu0 %v303
        %v565 = vpop.f32.mrf.mxu0
        %v566 = vadd.f32 0.0, %v565
        %567 = vmatmul.f32.gmra.mxu0 %v306
        %v568 = vpop.f32.mrf.mxu0
        %v569 = vadd.f32 0.0, %v568
        %570 = vmatmul.f32.gmra.mxu0 %v309
        %v571 = vpop.f32.mrf.mxu0
        %v572 = vadd.f32 0.0, %v571
        %573 = vmatmul.f32.gmra.mxu0 %v312
        %v574 = vpop.f32.mrf.mxu0
        %v575 = vadd.f32 0.0, %v574
        %576 = vdwg.mxu0
        %577 = vmatpush.msra.mxu0 0.0
        %578 = vmatpush.msra.mxu0 0.0
        %579 = vmatpush.msra.mxu0 0.0
        %580 = vmatpush.msra.mxu0 0.0
        %581 = vmatpush.msra.mxu0 0.0
        %582 = vmatpush.msra.mxu0 0.0
        %583 = vmatpush.msra.mxu0 0.0
        %584 = vmatpush.msra.mxu0 0.0
        %585 = vmatpush.msra.mxu0 0.0
        %586 = vmatpush.msra.mxu0 0.0
        %587 = vmatpush.msra.mxu0 0.0
        %588 = vmatpush.msra.mxu0 0.0
        %589 = vmatpush.msra.mxu0 0.0
        %590 = vmatpush.msra.mxu0 0.0
        %591 = vmatpush.msra.mxu0 0.0
        %592 = vmatpush.msra.mxu0 %v327
        %593 = vmatmul.f32.gmra.mxu0 %v291
        %v594 = vpop.f32.mrf.mxu0
        %v595 = vadd.f32 0.0, %v594
        %596 = vmatmul.f32.gmra.mxu0 %v294
        %v597 = vpop.f32.mrf.mxu0
        %v598 = vadd.f32 0.0, %v597
        %599 = vmatmul.f32.gmra.mxu0 %v297
        %v600 = vpop.f32.mrf.mxu0
        %v601 = vadd.f32 0.0, %v600
        %602 = vmatmul.f32.gmra.mxu0 %v300
        %v603 = vpop.f32.mrf.mxu0
        %v604 = vadd.f32 0.0, %v603
        %605 = vmatmul.f32.gmra.mxu0 %v303
        %v606 = vpop.f32.mrf.mxu0
        %v607 = vadd.f32 0.0, %v606
        %608 = vmatmul.f32.gmra.mxu0 %v306
        %v609 = vpop.f32.mrf.mxu0
        %v610 = vadd.f32 0.0, %v609
        %611 = vmatmul.f32.gmra.mxu0 %v309
        %v612 = vpop.f32.mrf.mxu0
        %v613 = vadd.f32 0.0, %v612
        %614 = vmatmul.f32.gmra.mxu0 %v312
        %v615 = vpop.f32.mrf.mxu0
        %v616 = vadd.f32 0.0, %v615
        %617 = vdwg.mxu0
        %618 = vmatpush.msra.mxu0 0.0
        %619 = vmatpush.msra.mxu0 0.0
        %620 = vmatpush.msra.mxu0 0.0
        %621 = vmatpush.msra.mxu0 0.0
        %622 = vmatpush.msra.mxu0 0.0
        %623 = vmatpush.msra.mxu0 0.0
        %624 = vmatpush.msra.mxu0 0.0
        %625 = vmatpush.msra.mxu0 0.0
        %626 = vmatpush.msra.mxu0 0.0
        %627 = vmatpush.msra.mxu0 0.0
        %628 = vmatpush.msra.mxu0 0.0
        %629 = vmatpush.msra.mxu0 0.0
        %630 = vmatpush.msra.mxu0 0.0
        %631 = vmatpush.msra.mxu0 0.0
        %632 = vmatpush.msra.mxu0 0.0
        %633 = vmatpush.msra.mxu0 %v329
        %634 = vmatmul.f32.gmra.mxu0 %v291
        %v635 = vpop.f32.mrf.mxu0
        %v636 = vadd.f32 0.0, %v635
        %637 = vmatmul.f32.gmra.mxu0 %v294
        %v638 = vpop.f32.mrf.mxu0
        %v639 = vadd.f32 0.0, %v638
        %640 = vmatmul.f32.gmra.mxu0 %v297
        %v641 = vpop.f32.mrf.mxu0
        %v642 = vadd.f32 0.0, %v641
        %643 = vmatmul.f32.gmra.mxu0 %v300
        %v644 = vpop.f32.mrf.mxu0
        %v645 = vadd.f32 0.0, %v644
        %646 = vmatmul.f32.gmra.mxu0 %v303
        %v647 = vpop.f32.mrf.mxu0
        %v648 = vadd.f32 0.0, %v647
        %649 = vmatmul.f32.gmra.mxu0 %v306
        %v650 = vpop.f32.mrf.mxu0
        %v651 = vadd.f32 0.0, %v650
        %652 = vmatmul.f32.gmra.mxu0 %v309
        %v653 = vpop.f32.mrf.mxu0
        %v654 = vadd.f32 0.0, %v653
        %655 = vmatmul.f32.gmra.mxu0 %v312
        %v656 = vpop.f32.mrf.mxu0
        %v657 = vadd.f32 0.0, %v656
        %658 = vdwg.mxu0
        %v659 = vld [vmem:[%s231] sm:$0xff]
        %v660 = vld [vmem:[%s231 + $0x8] sm:$0xff]
        %v661 = vld [vmem:[%s231 + $0x10] sm:$0xff]
        %v662 = vld [vmem:[%s231 + $0x18] sm:$0xff]
        %v663 = vld [vmem:[%s231 + $0x20] sm:$0xff]
        %v664 = vld [vmem:[%s231 + $0x28] sm:$0xff]
        %v665 = vld [vmem:[%s231 + $0x30] sm:$0xff]
        %v666 = vld [vmem:[%s231 + $0x38] sm:$0xff]
        %668 = vset.pattern.permute.xlu0 0
        %669 = vperm.xlu0 %668, %v659
        %v670 = vpop.permute.xlu0 %669
        %673 = vset.pattern.permute.xlu0 0
        %674 = vperm.xlu0 %673, %v660
        %v675 = vpop.permute.xlu0 %674
        %678 = vset.pattern.permute.xlu0 0
        %679 = vperm.xlu0 %678, %v661
        %v680 = vpop.permute.xlu0 %679
        %683 = vset.pattern.permute.xlu0 0
        %684 = vperm.xlu0 %683, %v662
        %v685 = vpop.permute.xlu0 %684
        %688 = vset.pattern.permute.xlu0 0
        %689 = vperm.xlu0 %688, %v663
        %v690 = vpop.permute.xlu0 %689
        %693 = vset.pattern.permute.xlu0 0
        %694 = vperm.xlu0 %693, %v664
        %v695 = vpop.permute.xlu0 %694
        %698 = vset.pattern.permute.xlu0 0
        %699 = vperm.xlu0 %698, %v665
        %v700 = vpop.permute.xlu0 %699
        %703 = vset.pattern.permute.xlu0 0
        %704 = vperm.xlu0 %703, %v666
        %v705 = vpop.permute.xlu0 %704
        %v707 = vsub.f32 %v349, %v670
        %v708 = vsub.f32 %v390, %v670
        %v709 = vsub.f32 %v431, %v670
        %v710 = vsub.f32 %v472, %v670
        %v711 = vsub.f32 %v513, %v670
        %v712 = vsub.f32 %v554, %v670
        %v713 = vsub.f32 %v595, %v670
        %v714 = vsub.f32 %v636, %v670
        %v715 = vsub.f32 %v352, %v675
        %v716 = vsub.f32 %v393, %v675
        %v717 = vsub.f32 %v434, %v675
        %v718 = vsub.f32 %v475, %v675
        %v719 = vsub.f32 %v516, %v675
        %v720 = vsub.f32 %v557, %v675
        %v721 = vsub.f32 %v598, %v675
        %v722 = vsub.f32 %v639, %v675
        %v723 = vsub.f32 %v355, %v680
        %v724 = vsub.f32 %v396, %v680
        %v725 = vsub.f32 %v437, %v680
        %v726 = vsub.f32 %v478, %v680
        %v727 = vsub.f32 %v519, %v680
        %v728 = vsub.f32 %v560, %v680
        %v729 = vsub.f32 %v601, %v680
        %v730 = vsub.f32 %v642, %v680
        %v731 = vsub.f32 %v358, %v685
        %v732 = vsub.f32 %v399, %v685
        %v733 = vsub.f32 %v440, %v685
        %v734 = vsub.f32 %v481, %v685
        %v735 = vsub.f32 %v522, %v685
        %v736 = vsub.f32 %v563, %v685
        %v737 = vsub.f32 %v604, %v685
        %v738 = vsub.f32 %v645, %v685
        %v739 = vsub.f32 %v361, %v690
        %v740 = vsub.f32 %v402, %v690
        %v741 = vsub.f32 %v443, %v690
        %v742 = vsub.f32 %v484, %v690
        %v743 = vsub.f32 %v525, %v690
        %v744 = vsub.f32 %v566, %v690
        %v745 = vsub.f32 %v607, %v690
        %v746 = vsub.f32 %v648, %v690
        %v747 = vsub.f32 %v364, %v695
        %v748 = vsub.f32 %v405, %v695
        %v749 = vsub.f32 %v446, %v695
        %v750 = vsub.f32 %v487, %v695
        %v751 = vsub.f32 %v528, %v695
        %v752 = vsub.f32 %v569, %v695
        %v753 = vsub.f32 %v610, %v695
        %v754 = vsub.f32 %v651, %v695
        %v755 = vsub.f32 %v367, %v700
        %v756 = vsub.f32 %v408, %v700
        %v757 = vsub.f32 %v449, %v700
        %v758 = vsub.f32 %v490, %v700
        %v759 = vsub.f32 %v531, %v700
        %v760 = vsub.f32 %v572, %v700
        %v761 = vsub.f32 %v613, %v700
        %v762 = vsub.f32 %v654, %v700
        %v763 = vsub.f32 %v370, %v705
        %v764 = vsub.f32 %v411, %v705
        %v765 = vsub.f32 %v452, %v705
        %v766 = vsub.f32 %v493, %v705
        %v767 = vsub.f32 %v534, %v705
        %v768 = vsub.f32 %v575, %v705
        %v769 = vsub.f32 %v616, %v705
        %v770 = vsub.f32 %v657, %v705
        %v771 = vmul.f32 %v707, 0.01
        %v772 = vmul.f32 %v708, 0.01
        %v773 = vmul.f32 %v709, 0.01
        %v774 = vmul.f32 %v710, 0.01
        %v775 = vmul.f32 %v711, 0.01
        %v776 = vmul.f32 %v712, 0.01
        %v777 = vmul.f32 %v713, 0.01
        %v778 = vmul.f32 %v714, 0.01
        %v779 = vmul.f32 %v715, 0.01
        %v780 = vmul.f32 %v716, 0.01
        %v781 = vmul.f32 %v717, 0.01
        %v782 = vmul.f32 %v718, 0.01
        %v783 = vmul.f32 %v719, 0.01
        %v784 = vmul.f32 %v720, 0.01
        %v785 = vmul.f32 %v721, 0.01
        %v786 = vmul.f32 %v722, 0.01
        %v787 = vmul.f32 %v723, 0.01
        %v788 = vmul.f32 %v724, 0.01
        %v789 = vmul.f32 %v725, 0.01
        %v790 = vmul.f32 %v726, 0.01
        %v791 = vmul.f32 %v727, 0.01
        %v792 = vmul.f32 %v728, 0.01
        %v793 = vmul.f32 %v729, 0.01
        %v794 = vmul.f32 %v730, 0.01
        %v795 = vmul.f32 %v731, 0.01
        %v796 = vmul.f32 %v732, 0.01
        %v797 = vmul.f32 %v733, 0.01
        %v798 = vmul.f32 %v734, 0.01
        %v799 = vmul.f32 %v735, 0.01
        %v800 = vmul.f32 %v736, 0.01
        %v801 = vmul.f32 %v737, 0.01
        %v802 = vmul.f32 %v738, 0.01
        %v803 = vmul.f32 %v739, 0.01
        %v804 = vmul.f32 %v740, 0.01
        %v805 = vmul.f32 %v741, 0.01
        %v806 = vmul.f32 %v742, 0.01
        %v807 = vmul.f32 %v743, 0.01
        %v808 = vmul.f32 %v744, 0.01
        %v809 = vmul.f32 %v745, 0.01
        %v810 = vmul.f32 %v746, 0.01
        %v811 = vmul.f32 %v747, 0.01
        %v812 = vmul.f32 %v748, 0.01
        %v813 = vmul.f32 %v749, 0.01
        %v814 = vmul.f32 %v750, 0.01
        %v815 = vmul.f32 %v751, 0.01
        %v816 = vmul.f32 %v752, 0.01
        %v817 = vmul.f32 %v753, 0.01
        %v818 = vmul.f32 %v754, 0.01
        %v819 = vmul.f32 %v755, 0.01
        %v820 = vmul.f32 %v756, 0.01
        %v821 = vmul.f32 %v757, 0.01
        %v822 = vmul.f32 %v758, 0.01
        %v823 = vmul.f32 %v759, 0.01
        %v824 = vmul.f32 %v760, 0.01
        %v825 = vmul.f32 %v761, 0.01
        %v826 = vmul.f32 %v762, 0.01
        %v827 = vmul.f32 %v763, 0.01
        %v828 = vmul.f32 %v764, 0.01
        %v829 = vmul.f32 %v765, 0.01
        %v830 = vmul.f32 %v766, 0.01
        %v831 = vmul.f32 %v767, 0.01
        %v832 = vmul.f32 %v768, 0.01
        %v833 = vmul.f32 %v769, 0.01
        %v834 = vmul.f32 %v770, 0.01
        %v835 = vmax.f32 %v707, %v771
        %v836 = vmax.f32 %v708, %v772
        %v837 = vmax.f32 %v709, %v773
        %v838 = vmax.f32 %v710, %v774
        %v839 = vmax.f32 %v711, %v775
        %v840 = vmax.f32 %v712, %v776
        %v841 = vmax.f32 %v713, %v777
        %v842 = vmax.f32 %v714, %v778
        %v843 = vmax.f32 %v715, %v779
        %v844 = vmax.f32 %v716, %v780
        %v845 = vmax.f32 %v717, %v781
        %v846 = vmax.f32 %v718, %v782
        %v847 = vmax.f32 %v719, %v783
        %v848 = vmax.f32 %v720, %v784
        %v849 = vmax.f32 %v721, %v785
        %v850 = vmax.f32 %v722, %v786
        %v851 = vmax.f32 %v723, %v787
        %v852 = vmax.f32 %v724, %v788
        %v853 = vmax.f32 %v725, %v789
        %v854 = vmax.f32 %v726, %v790
        %v855 = vmax.f32 %v727, %v791
        %v856 = vmax.f32 %v728, %v792
        %v857 = vmax.f32 %v729, %v793
        %v858 = vmax.f32 %v730, %v794
        %v859 = vmax.f32 %v731, %v795
        %v860 = vmax.f32 %v732, %v796
        %v861 = vmax.f32 %v733, %v797
        %v862 = vmax.f32 %v734, %v798
        %v863 = vmax.f32 %v735, %v799
        %v864 = vmax.f32 %v736, %v800
        %v865 = vmax.f32 %v737, %v801
        %v866 = vmax.f32 %v738, %v802
        %v867 = vmax.f32 %v739, %v803
        %v868 = vmax.f32 %v740, %v804
        %v869 = vmax.f32 %v741, %v805
        %v870 = vmax.f32 %v742, %v806
        %v871 = vmax.f32 %v743, %v807
        %v872 = vmax.f32 %v744, %v808
        %v873 = vmax.f32 %v745, %v809
        %v874 = vmax.f32 %v746, %v810
        %v875 = vmax.f32 %v747, %v811
        %v876 = vmax.f32 %v748, %v812
        %v877 = vmax.f32 %v749, %v813
        %v878 = vmax.f32 %v750, %v814
        %v879 = vmax.f32 %v751, %v815
        %v880 = vmax.f32 %v752, %v816
        %v881 = vmax.f32 %v753, %v817
        %v882 = vmax.f32 %v754, %v818
        %v883 = vmax.f32 %v755, %v819
        %v884 = vmax.f32 %v756, %v820
        %v885 = vmax.f32 %v757, %v821
        %v886 = vmax.f32 %v758, %v822
        %v887 = vmax.f32 %v759, %v823
        %v888 = vmax.f32 %v760, %v824
        %v889 = vmax.f32 %v761, %v825
        %v890 = vmax.f32 %v762, %v826
        %v891 = vmax.f32 %v763, %v827
        %v892 = vmax.f32 %v764, %v828
        %v893 = vmax.f32 %v765, %v829
        %v894 = vmax.f32 %v766, %v830
        %v895 = vmax.f32 %v767, %v831
        %v896 = vmax.f32 %v768, %v832
        %v897 = vmax.f32 %v769, %v833
        %v898 = vmax.f32 %v770, %v834
        %899 = vst [vmem:[%s212] sm:$0xff] %v835
        %900 = vst [vmem:[%s212 + $0x8] sm:$0xff] %v836
        %901 = vst [vmem:[%s212 + $0x10] sm:$0xff] %v837
        %902 = vst [vmem:[%s212 + $0x18] sm:$0xff] %v838
        %903 = vst [vmem:[%s212 + $0x20] sm:$0xff] %v839
        %904 = vst [vmem:[%s212 + $0x28] sm:$0xff] %v840
        %905 = vst [vmem:[%s212 + $0x30] sm:$0xff] %v841
        %906 = vst [vmem:[%s212 + $0x38] sm:$0xff] %v842
        %907 = vst [vmem:[%s212 + $0x40] sm:$0xff] %v843
        %908 = vst [vmem:[%s212 + $0x48] sm:$0xff] %v844
        %909 = vst [vmem:[%s212 + $0x50] sm:$0xff] %v845
        %910 = vst [vmem:[%s212 + $0x58] sm:$0xff] %v846
        %911 = vst [vmem:[%s212 + $0x60] sm:$0xff] %v847
        %912 = vst [vmem:[%s212 + $0x68] sm:$0xff] %v848
        %913 = vst [vmem:[%s212 + $0x70] sm:$0xff] %v849
        %914 = vst [vmem:[%s212 + $0x78] sm:$0xff] %v850
        %915 = vst [vmem:[%s212 + $0x80] sm:$0xff] %v851
        %916 = vst [vmem:[%s212 + $0x88] sm:$0xff] %v852
        %917 = vst [vmem:[%s212 + $0x90] sm:$0xff] %v853
        %918 = vst [vmem:[%s212 + $0x98] sm:$0xff] %v854
        %919 = vst [vmem:[%s212 + $0xa0] sm:$0xff] %v855
        %920 = vst [vmem:[%s212 + $0xa8] sm:$0xff] %v856
        %921 = vst [vmem:[%s212 + $0xb0] sm:$0xff] %v857
        %922 = vst [vmem:[%s212 + $0xb8] sm:$0xff] %v858
        %923 = vst [vmem:[%s212 + $0xc0] sm:$0xff] %v859
        %924 = vst [vmem:[%s212 + $0xc8] sm:$0xff] %v860
        %925 = vst [vmem:[%s212 + $0xd0] sm:$0xff] %v861
        %926 = vst [vmem:[%s212 + $0xd8] sm:$0xff] %v862
        %927 = vst [vmem:[%s212 + $0xe0] sm:$0xff] %v863
        %928 = vst [vmem:[%s212 + $0xe8] sm:$0xff] %v864
        %929 = vst [vmem:[%s212 + $0xf0] sm:$0xff] %v865
        %930 = vst [vmem:[%s212 + $0xf8] sm:$0xff] %v866
        %931 = vst [vmem:[%s212 + $0x100] sm:$0xff] %v867
        %932 = vst [vmem:[%s212 + $0x108] sm:$0xff] %v868
        %933 = vst [vmem:[%s212 + $0x110] sm:$0xff] %v869
        %934 = vst [vmem:[%s212 + $0x118] sm:$0xff] %v870
        %935 = vst [vmem:[%s212 + $0x120] sm:$0xff] %v871
        %936 = vst [vmem:[%s212 + $0x128] sm:$0xff] %v872
        %937 = vst [vmem:[%s212 + $0x130] sm:$0xff] %v873
        %938 = vst [vmem:[%s212 + $0x138] sm:$0xff] %v874
        %939 = vst [vmem:[%s212 + $0x140] sm:$0xff] %v875
        %940 = vst [vmem:[%s212 + $0x148] sm:$0xff] %v876
        %941 = vst [vmem:[%s212 + $0x150] sm:$0xff] %v877
        %942 = vst [vmem:[%s212 + $0x158] sm:$0xff] %v878
        %943 = vst [vmem:[%s212 + $0x160] sm:$0xff] %v879
        %944 = vst [vmem:[%s212 + $0x168] sm:$0xff] %v880
        %945 = vst [vmem:[%s212 + $0x170] sm:$0xff] %v881
        %946 = vst [vmem:[%s212 + $0x178] sm:$0xff] %v882
        %947 = vst [vmem:[%s212 + $0x180] sm:$0xff] %v883
        %948 = vst [vmem:[%s212 + $0x188] sm:$0xff] %v884
        %949 = vst [vmem:[%s212 + $0x190] sm:$0xff] %v885
        %950 = vst [vmem:[%s212 + $0x198] sm:$0xff] %v886
        %951 = vst [vmem:[%s212 + $0x1a0] sm:$0xff] %v887
        %952 = vst [vmem:[%s212 + $0x1a8] sm:$0xff] %v888
        %953 = vst [vmem:[%s212 + $0x1b0] sm:$0xff] %v889
        %954 = vst [vmem:[%s212 + $0x1b8] sm:$0xff] %v890
        %955 = vst [vmem:[%s212 + $0x1c0] sm:$0xff] %v891
        %956 = vst [vmem:[%s212 + $0x1c8] sm:$0xff] %v892
        %957 = vst [vmem:[%s212 + $0x1d0] sm:$0xff] %v893
        %958 = vst [vmem:[%s212 + $0x1d8] sm:$0xff] %v894
        %959 = vst [vmem:[%s212 + $0x1e0] sm:$0xff] %v895
        %960 = vst [vmem:[%s212 + $0x1e8] sm:$0xff] %v896
        %961 = vst [vmem:[%s212 + $0x1f0] sm:$0xff] %v897
        %962 = vst [vmem:[%s212 + $0x1f8] sm:$0xff] %v898
        %s963 = sand.u32 %s116, 1
        %s964 = sand.u32 %s116, 1
        %s965 = smul.addr %s964, 512
        %s966 = scalar_lea.vmem [#allocation2], %s965
        // Predicated region
        $region33: #{up_conv3d_forward.3} parent=31 // pred_check
          %p967 = pneg %p126
        $region34: #{up_conv3d_forward.3} parent=31 // pred_check_branch
          %969 = sbr.rel (%p967) target = $region36
        $region35: #{up_conv3d_forward.3} parent=31 // pred_region
          %s970 = smul.u32 8, %s19
          %s971 = smul.addr %s18, 256
          %s972 = sadd.s32 %s970, %s971
          %s973 = smul.addr %s972, 8
          %s974 = scalar_lea.vmem %s3, %s973
          // Predicated region
          $region37: #{up_conv3d_forward.3} parent=35 // pred_check
            _
          $region38: #{up_conv3d_forward.3} parent=35 // pred_check_branch
            %976 = sbr.rel (0) target = $region40
          $region39: #{up_conv3d_forward.3} parent=35 // pred_region
            // Predicated region
            $region41: #{up_conv3d_forward.3} parent=39 // pred_check
              _
            $region42: #{up_conv3d_forward.3} parent=39 // pred_check_branch
              %978 = sbr.rel (0) target = $region44
            $region43: #{up_conv3d_forward.3} parent=39 // pred_region
              loop: start=0, step=1, limit=1
              $region45: #{up_conv3d_forward.3} parent=43 // loop_pre_header
                _
              $region46: #{up_conv3d_forward.3} parent=43 // loop_header
                %s980 = sphi 0, %s984
                %p981 = scmp.ge.s32.totalorder %s980, 1
                %s985 = sphi %s966, %s966
                %s986 = sphi %s974, %s974
              $region47: #{up_conv3d_forward.3} parent=43 // loop_header_branch
                %983 = sbr.rel (%p981) target = $region51
              $region48: #{up_conv3d_forward.3} parent=43 // loop_body
                %v987 = vld [vmem:[%s985] sm:$0xff]
                %988 = vst [vmem:[%s986] sm:$0xff] %v987
                %v989 = vld [vmem:[%s985 + $0x8] sm:$0xff]
                %990 = vst [vmem:[%s986 + $0x8] sm:$0xff] %v989
                %v991 = vld [vmem:[%s985 + $0x10] sm:$0xff]
                %992 = vst [vmem:[%s986 + $0x10] sm:$0xff] %v991
                %v993 = vld [vmem:[%s985 + $0x18] sm:$0xff]
                %994 = vst [vmem:[%s986 + $0x18] sm:$0xff] %v993
                %v995 = vld [vmem:[%s985 + $0x20] sm:$0xff]
                %996 = vst [vmem:[%s986 + $0x20] sm:$0xff] %v995
                %v997 = vld [vmem:[%s985 + $0x28] sm:$0xff]
                %998 = vst [vmem:[%s986 + $0x28] sm:$0xff] %v997
                %v999 = vld [vmem:[%s985 + $0x30] sm:$0xff]
                %1000 = vst [vmem:[%s986 + $0x30] sm:$0xff] %v999
                %v1001 = vld [vmem:[%s985 + $0x38] sm:$0xff]
                %1002 = vst [vmem:[%s986 + $0x38] sm:$0xff] %v1001
                %v1003 = vld [vmem:[%s985 + $0x40] sm:$0xff]
                %1004 = vst [vmem:[%s986 + $0x100] sm:$0xff] %v1003
                %v1005 = vld [vmem:[%s985 + $0x48] sm:$0xff]
                %1006 = vst [vmem:[%s986 + $0x108] sm:$0xff] %v1005
                %v1007 = vld [vmem:[%s985 + $0x50] sm:$0xff]
                %1008 = vst [vmem:[%s986 + $0x110] sm:$0xff] %v1007
                %v1009 = vld [vmem:[%s985 + $0x58] sm:$0xff]
                %1010 = vst [vmem:[%s986 + $0x118] sm:$0xff] %v1009
                %v1011 = vld [vmem:[%s985 + $0x60] sm:$0xff]
                %1012 = vst [vmem:[%s986 + $0x120] sm:$0xff] %v1011
                %v1013 = vld [vmem:[%s985 + $0x68] sm:$0xff]
                %1014 = vst [vmem:[%s986 + $0x128] sm:$0xff] %v1013
                %v1015 = vld [vmem:[%s985 + $0x70] sm:$0xff]
                %1016 = vst [vmem:[%s986 + $0x130] sm:$0xff] %v1015
                %v1017 = vld [vmem:[%s985 + $0x78] sm:$0xff]
                %1018 = vst [vmem:[%s986 + $0x138] sm:$0xff] %v1017
                %v1019 = vld [vmem:[%s985 + $0x80] sm:$0xff]
                %1020 = vst [vmem:[%s986 + $0x200] sm:$0xff] %v1019
                %v1021 = vld [vmem:[%s985 + $0x88] sm:$0xff]
                %1022 = vst [vmem:[%s986 + $0x208] sm:$0xff] %v1021
                %v1023 = vld [vmem:[%s985 + $0x90] sm:$0xff]
                %1024 = vst [vmem:[%s986 + $0x210] sm:$0xff] %v1023
                %v1025 = vld [vmem:[%s985 + $0x98] sm:$0xff]
                %1026 = vst [vmem:[%s986 + $0x218] sm:$0xff] %v1025
                %v1027 = vld [vmem:[%s985 + $0xa0] sm:$0xff]
                %1028 = vst [vmem:[%s986 + $0x220] sm:$0xff] %v1027
                %v1029 = vld [vmem:[%s985 + $0xa8] sm:$0xff]
                %1030 = vst [vmem:[%s986 + $0x228] sm:$0xff] %v1029
                %v1031 = vld [vmem:[%s985 + $0xb0] sm:$0xff]
                %1032 = vst [vmem:[%s986 + $0x230] sm:$0xff] %v1031
                %v1033 = vld [vmem:[%s985 + $0xb8] sm:$0xff]
                %1034 = vst [vmem:[%s986 + $0x238] sm:$0xff] %v1033
                %v1035 = vld [vmem:[%s985 + $0xc0] sm:$0xff]
                %1036 = vst [vmem:[%s986 + $0x300] sm:$0xff] %v1035
                %v1037 = vld [vmem:[%s985 + $0xc8] sm:$0xff]
                %1038 = vst [vmem:[%s986 + $0x308] sm:$0xff] %v1037
                %v1039 = vld [vmem:[%s985 + $0xd0] sm:$0xff]
                %1040 = vst [vmem:[%s986 + $0x310] sm:$0xff] %v1039
                %v1041 = vld [vmem:[%s985 + $0xd8] sm:$0xff]
                %1042 = vst [vmem:[%s986 + $0x318] sm:$0xff] %v1041
                %v1043 = vld [vmem:[%s985 + $0xe0] sm:$0xff]
                %1044 = vst [vmem:[%s986 + $0x320] sm:$0xff] %v1043
                %v1045 = vld [vmem:[%s985 + $0xe8] sm:$0xff]
                %1046 = vst [vmem:[%s986 + $0x328] sm:$0xff] %v1045
                %v1047 = vld [vmem:[%s985 + $0xf0] sm:$0xff]
                %1048 = vst [vmem:[%s986 + $0x330] sm:$0xff] %v1047
                %v1049 = vld [vmem:[%s985 + $0xf8] sm:$0xff]
                %1050 = vst [vmem:[%s986 + $0x338] sm:$0xff] %v1049
                %v1051 = vld [vmem:[%s985 + $0x100] sm:$0xff]
                %1052 = vst [vmem:[%s986 + $0x400] sm:$0xff] %v1051
                %v1053 = vld [vmem:[%s985 + $0x108] sm:$0xff]
                %1054 = vst [vmem:[%s986 + $0x408] sm:$0xff] %v1053
                %v1055 = vld [vmem:[%s985 + $0x110] sm:$0xff]
                %1056 = vst [vmem:[%s986 + $0x410] sm:$0xff] %v1055
                %v1057 = vld [vmem:[%s985 + $0x118] sm:$0xff]
                %1058 = vst [vmem:[%s986 + $0x418] sm:$0xff] %v1057
                %v1059 = vld [vmem:[%s985 + $0x120] sm:$0xff]
                %1060 = vst [vmem:[%s986 + $0x420] sm:$0xff] %v1059
                %v1061 = vld [vmem:[%s985 + $0x128] sm:$0xff]
                %1062 = vst [vmem:[%s986 + $0x428] sm:$0xff] %v1061
                %v1063 = vld [vmem:[%s985 + $0x130] sm:$0xff]
                %1064 = vst [vmem:[%s986 + $0x430] sm:$0xff] %v1063
                %v1065 = vld [vmem:[%s985 + $0x138] sm:$0xff]
                %1066 = vst [vmem:[%s986 + $0x438] sm:$0xff] %v1065
                %v1067 = vld [vmem:[%s985 + $0x140] sm:$0xff]
                %1068 = vst [vmem:[%s986 + $0x500] sm:$0xff] %v1067
                %v1069 = vld [vmem:[%s985 + $0x148] sm:$0xff]
                %1070 = vst [vmem:[%s986 + $0x508] sm:$0xff] %v1069
                %v1071 = vld [vmem:[%s985 + $0x150] sm:$0xff]
                %1072 = vst [vmem:[%s986 + $0x510] sm:$0xff] %v1071
                %v1073 = vld [vmem:[%s985 + $0x158] sm:$0xff]
                %1074 = vst [vmem:[%s986 + $0x518] sm:$0xff] %v1073
                %v1075 = vld [vmem:[%s985 + $0x160] sm:$0xff]
                %1076 = vst [vmem:[%s986 + $0x520] sm:$0xff] %v1075
                %v1077 = vld [vmem:[%s985 + $0x168] sm:$0xff]
                %1078 = vst [vmem:[%s986 + $0x528] sm:$0xff] %v1077
                %v1079 = vld [vmem:[%s985 + $0x170] sm:$0xff]
                %1080 = vst [vmem:[%s986 + $0x530] sm:$0xff] %v1079
                %v1081 = vld [vmem:[%s985 + $0x178] sm:$0xff]
                %1082 = vst [vmem:[%s986 + $0x538] sm:$0xff] %v1081
                %v1083 = vld [vmem:[%s985 + $0x180] sm:$0xff]
                %1084 = vst [vmem:[%s986 + $0x600] sm:$0xff] %v1083
                %v1085 = vld [vmem:[%s985 + $0x188] sm:$0xff]
                %1086 = vst [vmem:[%s986 + $0x608] sm:$0xff] %v1085
                %v1087 = vld [vmem:[%s985 + $0x190] sm:$0xff]
                %1088 = vst [vmem:[%s986 + $0x610] sm:$0xff] %v1087
                %v1089 = vld [vmem:[%s985 + $0x198] sm:$0xff]
                %1090 = vst [vmem:[%s986 + $0x618] sm:$0xff] %v1089
                %v1091 = vld [vmem:[%s985 + $0x1a0] sm:$0xff]
                %1092 = vst [vmem:[%s986 + $0x620] sm:$0xff] %v1091
                %v1093 = vld [vmem:[%s985 + $0x1a8] sm:$0xff]
                %1094 = vst [vmem:[%s986 + $0x628] sm:$0xff] %v1093
                %v1095 = vld [vmem:[%s985 + $0x1b0] sm:$0xff]
                %1096 = vst [vmem:[%s986 + $0x630] sm:$0xff] %v1095
                %v1097 = vld [vmem:[%s985 + $0x1b8] sm:$0xff]
                %1098 = vst [vmem:[%s986 + $0x638] sm:$0xff] %v1097
                %v1099 = vld [vmem:[%s985 + $0x1c0] sm:$0xff]
                %1100 = vst [vmem:[%s986 + $0x700] sm:$0xff] %v1099
                %v1101 = vld [vmem:[%s985 + $0x1c8] sm:$0xff]
                %1102 = vst [vmem:[%s986 + $0x708] sm:$0xff] %v1101
                %v1103 = vld [vmem:[%s985 + $0x1d0] sm:$0xff]
                %1104 = vst [vmem:[%s986 + $0x710] sm:$0xff] %v1103
                %v1105 = vld [vmem:[%s985 + $0x1d8] sm:$0xff]
                %1106 = vst [vmem:[%s986 + $0x718] sm:$0xff] %v1105
                %v1107 = vld [vmem:[%s985 + $0x1e0] sm:$0xff]
                %1108 = vst [vmem:[%s986 + $0x720] sm:$0xff] %v1107
                %v1109 = vld [vmem:[%s985 + $0x1e8] sm:$0xff]
                %1110 = vst [vmem:[%s986 + $0x728] sm:$0xff] %v1109
                %v1111 = vld [vmem:[%s985 + $0x1f0] sm:$0xff]
                %1112 = vst [vmem:[%s986 + $0x730] sm:$0xff] %v1111
                %v1113 = vld [vmem:[%s985 + $0x1f8] sm:$0xff]
                %1114 = vst [vmem:[%s986 + $0x738] sm:$0xff] %v1113
              $region49: #{up_conv3d_forward.3} parent=43 // loop_footer
                %s984 = sadd.s32 1, %s980
              $region50: #{up_conv3d_forward.3} parent=43 // loop_footer_branch
                %979 = sbr.rel target = $region46
              $region51: #{up_conv3d_forward.3} parent=43 // loop_exit
                _
            $region44: #{up_conv3d_forward.3} parent=39 // pred_fallthru
              _
            // Predicated region
            $region52: #{up_conv3d_forward.3} parent=39 // pred_check
              _
            $region53: #{up_conv3d_forward.3} parent=39 // pred_check_branch
              %1116 = sbr.rel target = $region55
            $region54: #{up_conv3d_forward.3} parent=39 // pred_region
              _
            $region55: #{up_conv3d_forward.3} parent=39 // pred_fallthru
              _
          $region40: #{up_conv3d_forward.3} parent=35 // pred_fallthru
            _
          %1117 = vnop
        $region36: #{up_conv3d_forward.3} parent=31 // pred_fallthru
          _
      $region32: #{up_conv3d_forward.3} parent=5 // pred_fallthru
        _
      %p1118 = scmp.le.s32.totalorder 2, %s9
      // Predicated region
      $region56: #{up_conv3d_forward.3} parent=5 // pred_check
        %p1119 = pneg %p1118
      $region57: #{up_conv3d_forward.3} parent=5 // pred_check_branch
        %1121 = sbr.rel (%p1119) target = $region59
      $region58: #{up_conv3d_forward.3} parent=5 // pred_region
        %s1122 = ssub.s32 %s9, 2
        // Predicated region
        $region60: #{up_conv3d_forward.3} parent=58 // pred_check
          %p1123 = pneg %p132
        $region61: #{up_conv3d_forward.3} parent=58 // pred_check_branch
          %1125 = sbr.rel (%p1123) target = $region63
        $region62: #{up_conv3d_forward.3} parent=58 // pred_region
          %s1126 = sand.u32 %s117, 1
          %s1127 = sand.u32 %s117, 1
          %s1128 = smul.addr %s1127, 512
          %s1129 = scalar_lea.vmem [#allocation2], %s1128
        $region63: #{up_conv3d_forward.3} parent=58 // pred_fallthru
          _
      $region59: #{up_conv3d_forward.3} parent=5 // pred_fallthru
        _
    $region6: #{up_conv3d_forward.3} parent=1 // loop_footer
      %s13 = sadd.s32 1, %s9
    $region7: #{up_conv3d_forward.3} parent=1 // loop_footer_branch
      %8 = sbr.rel target = $region3
    $region8: #{up_conv3d_forward.3} parent=1 // loop_exit
      _

</llo_original>
